<compile_context>
chip_gen: v7x
topology: tpu7x:2x2x1
jax: 0.10.0
libtpu: 0.0.40
codegen_flags: <defaults>
</compile_context>

<pallas_src>
import functools

import jax
import jax.numpy as jnp
import numpy as np
from jax.experimental import pallas as pl
from jax.experimental.pallas import tpu as pltpu


# ---------------------------------------------------------------------------
# Fused kernel: affine MLP + softplus + 3x3 conv + FiLM, one batch per grid step
# ---------------------------------------------------------------------------
def _fused_kernel(x_ref, w_ref, cb_ref, cond_ref, w1t_ref, b1t_ref, w2t_ref,
                  out_ref, *, c_out, w_virt, hv):
    # x_ref:    (C_in, PADLEN)    zero-padded, spatially flattened input (this batch)
    # w_ref:    (9, C_out, C_in)  conv weight, one (C_out, C_in) matrix per 3x3 tap
    # cb_ref:   (C_out, 1)        conv bias column
    # cond_ref: (COND, 1)         condition column (this batch)
    # w1t_ref:  (H_CH, COND)  b1t_ref: (H_CH, 1)  w2t_ref: (2*C_out, H_CH)
    # out_ref:  (C_out, HV)       NCHW-flat output, virtual row stride = W+2

    # ---- conditional affine MLP (transposed so channels stay on sublanes) ----
    h = jnp.dot(w1t_ref[...], cond_ref[...], preferred_element_type=jnp.float32)
    h = jax.nn.sigmoid(h + b1t_ref[...])                                  # (H_CH, 1)
    film = jnp.dot(w2t_ref[...], h, preferred_element_type=jnp.float32)   # (2*C_out, 1)
    scale = jnp.logaddexp(0.0, film[:c_out, :])                           # softplus(scale), (C_out, 1)
    fbias = film[c_out:, :]                                               # (C_out, 1)

    # ---- 3x3 conv: 9 accumulated (C_out, C_in) @ (C_in, HV) tap matmuls ----
    xb = x_ref[...]                                                       # (C_in, PADLEN)
    acc = jnp.zeros((c_out, hv), jnp.float32)
    for t in range(9):                                                    # static unroll
        off = (t // 3) * w_virt + (t % 3)
        acc = acc + jnp.dot(w_ref[t], xb[:, off:off + hv],
                            preferred_element_type=jnp.float32)

    # ---- conv bias + FiLM modulation, lane-dense store ----
    out_ref[...] = (acc + cb_ref[...]) * scale + fbias


# ---------------------------------------------------------------------------
# Forward wrapper: NCHW in, NCHW out
# ---------------------------------------------------------------------------
def conditional_layer_forward(x_nchw, condition, params):
    B, C_in, H, W = x_nchw.shape
    C_out = params["conv_w"].shape[0]
    COND = condition.shape[1]
    H_CH = params["w1"].shape[1]

    Wv = W + 2            # virtual (padded) row width
    HV = H * Wv           # lane-dense output width per (batch, channel)

    # Pad H by (1, 3): 1 real conv-pad row top/bottom plus 2 slack rows so every
    # tap slice [off, off + HV) (max off = 2*Wv + 2) stays in bounds.
    xp = jnp.pad(x_nchw, ((0, 0), (0, 0), (1, 3), (1, 1)))        # (B, C_in, H+4, W+2)
    padlen = (H + 4) * Wv
    x_flat = xp.reshape(B, C_in, padlen)                          # contiguous -> free

    # Conv weight as per-tap (C_out, C_in) matrices, tap index t = di*3 + dj.
    w_taps = jnp.transpose(params["conv_w"], (2, 3, 0, 1)).reshape(9, C_out, C_in)
    cb_col = params["conv_b"].reshape(C_out, 1)

    # Conditional-path params, transposed (channel dim on sublanes).
    cond3 = condition.reshape(B, COND, 1)                         # per-batch (COND, 1) block
    w1t = jnp.transpose(params["w1"])                             # (H_CH, COND)
    b1t = jnp.transpose(params["b1"])                             # (H_CH, 1)
    w2t = jnp.transpose(params["w2"])                             # (2*C_out, H_CH)

    kernel = functools.partial(_fused_kernel, c_out=C_out, w_virt=Wv, hv=HV)

    out_v = pl.pallas_call(
        kernel,
        out_shape=jax.ShapeDtypeStruct((B, C_out, HV), jnp.float32),
        grid=(B,),
        in_specs=[
            pl.BlockSpec((None, C_in, padlen), lambda b: (b, 0, 0)),    # per-batch input
            pl.BlockSpec((9, C_out, C_in), lambda b: (0, 0, 0)),        # conv weight (shared)
            pl.BlockSpec((C_out, 1), lambda b: (0, 0)),                 # conv bias (shared)
            pl.BlockSpec((None, COND, 1), lambda b: (b, 0, 0)),         # per-batch condition
            pl.BlockSpec((H_CH, COND), lambda b: (0, 0)),               # affine W1^T (shared)
            pl.BlockSpec((H_CH, 1), lambda b: (0, 0)),                  # affine b1^T (shared)
            pl.BlockSpec((2 * C_out, H_CH), lambda b: (0, 0)),          # affine W2^T (shared)
        ],
        out_specs=pl.BlockSpec((None, C_out, HV), lambda b: (b, 0, 0)),
        compiler_params=pltpu.CompilerParams(
            dimension_semantics=("parallel",)),                         # v7x: 2 TCs split batches
    )(x_flat, w_taps, cb_col, cond3, w1t, b1t, w2t)

    # (B, C_out, HV) is already NCHW-flat with row stride W+2; drop the 2 junk
    # columns per row (free reshape + tiny slice, only remaining host-side glue).
    out = out_v.reshape(B, C_out, H, Wv)[:, :, :, :W]
    return out


# ---------------------------------------------------------------------------
# Deterministic parameters + pure-JAX reference
# ---------------------------------------------------------------------------
def make_params(key, c_in, c_out, conditions, h_channels):
    k1, k2, k3, k4, k5 = jax.random.split(key, 5)
    return {
        "conv_w": jax.random.normal(k1, (c_out, c_in, 3, 3), jnp.float32) * 0.2,
        "conv_b": jax.random.normal(k2, (c_out,), jnp.float32) * 0.1,
        "w1": jax.random.normal(k3, (conditions, h_channels), jnp.float32) * 0.5,
        "b1": jax.random.normal(k4, (1, h_channels), jnp.float32) * 0.1,
        "w2": jax.random.normal(k5, (h_channels, 2 * c_out), jnp.float32) * 0.3,
    }


def reference_forward(x, condition, params):
    c_out = params["conv_w"].shape[0]
    conv = jax.lax.conv_general_dilated(
        x, params["conv_w"], window_strides=(1, 1), padding="SAME",
        dimension_numbers=("NCHW", "OIHW", "NCHW"),
    ) + params["conv_b"][None, :, None, None]
    h = jax.nn.sigmoid(condition @ params["w1"] + params["b1"])
    film = h @ params["w2"]
    scale = film[:, :c_out][:, :, None, None]
    bias = film[:, c_out:][:, :, None, None]
    return conv * jax.nn.softplus(scale) + bias


if __name__ == "__main__":
    B, C_in, H, W = 2, 4, 16, 16
    C_out, conditions, h_channels = 8, 1, 16

    key = jax.random.PRNGKey(0)
    kx, kc, kp = jax.random.split(key, 3)
    x = jax.random.normal(kx, (B, C_in, H, W), jnp.float32)
    condition = jax.random.normal(kc, (B, conditions), jnp.float32)
    params = make_params(kp, C_in, C_out, conditions, h_channels)

    out = jax.block_until_ready(conditional_layer_forward(x, condition, params))
    ref = jax.block_until_ready(reference_forward(x, condition, params))
    np.testing.assert_allclose(np.asarray(out), np.asarray(ref), rtol=1e-4, atol=1e-4)

    print("KERNEL_OK")
</pallas_src>

<mosaic_0001>
module attributes {stable_mosaic.version = 11 : i64} {
  func.func @_fused_kernel(%arg0: i32, %arg1: memref<1x4x360xf32, #tpu.memory_space<vmem>>, %arg2: memref<9x8x4xf32, #tpu.memory_space<vmem>>, %arg3: memref<8x1xf32, #tpu.memory_space<vmem>>, %arg4: memref<1x1x1xf32, #tpu.memory_space<vmem>>, %arg5: memref<16x1xf32, #tpu.memory_space<vmem>>, %arg6: memref<16x1xf32, #tpu.memory_space<vmem>>, %arg7: memref<16x16xf32, #tpu.memory_space<vmem>>, %arg8: memref<1x8x288xf32, #tpu.memory_space<vmem>>) attributes {dimension_semantics = [#tpu.dimension_semantics<parallel>], iteration_bounds = array<i64: 2>, scalar_prefetch = 0 : i64, scratch_operands = 0 : i64, tpu.core_type = #tpu.core_type<tc>, window_params = [{transform_indices = @transform_0, window_bounds = array<i64: 1, 4, 360>}, {pipeline_mode = #tpu.pipeline_mode<synchronous>, transform_indices = @transform_1, window_bounds = array<i64: 9, 8, 4>}, {pipeline_mode = #tpu.pipeline_mode<synchronous>, transform_indices = @transform_2, window_bounds = array<i64: 8, 1>}, {transform_indices = @transform_3, window_bounds = array<i64: 1, 1, 1>}, {pipeline_mode = #tpu.pipeline_mode<synchronous>, transform_indices = @transform_4, window_bounds = array<i64: 16, 1>}, {pipeline_mode = #tpu.pipeline_mode<synchronous>, transform_indices = @transform_5, window_bounds = array<i64: 16, 1>}, {pipeline_mode = #tpu.pipeline_mode<synchronous>, transform_indices = @transform_6, window_bounds = array<i64: 16, 16>}, {transform_indices = @transform_7, window_bounds = array<i64: 1, 8, 288>}]} {
    %c0 = arith.constant 0 : index
    %c0_0 = arith.constant 0 : index
    %0 = vector.load %arg5[%c0, %c0_0] : memref<16x1xf32, #tpu.memory_space<vmem>>, vector<16x1xf32>
    %c0_1 = arith.constant 0 : index
    %c0_2 = arith.constant 0 : index
    %c0_3 = arith.constant 0 : index
    %1 = vector.load %arg4[%c0_1, %c0_2, %c0_3] : memref<1x1x1xf32, #tpu.memory_space<vmem>>, vector<1x1x1xf32>
    %2 = vector.shape_cast %1 : vector<1x1x1xf32> to vector<1x1xf32>
    %cst = arith.constant dense<0.000000e+00> : vector<16x1xf32>
    %3 = tpu.matmul %0, %2, %cst {dimension_numbers = #tpu.dot_dimension_numbers<[1], [0], [0], [1], [0, 0, 1, 1], [], []>} : vector<16x1xf32>, vector<1x1xf32>, vector<16x1xf32> -> vector<16x1xf32>
    %c0_4 = arith.constant 0 : index
    %c0_5 = arith.constant 0 : index
    %4 = vector.load %arg6[%c0_4, %c0_5] : memref<16x1xf32, #tpu.memory_space<vmem>>, vector<16x1xf32>
    %5 = arith.addf %3, %4 : vector<16x1xf32>
    %6 = arith.negf %5 : vector<16x1xf32>
    %7 = math.exp %6 : vector<16x1xf32>
    %cst_6 = arith.constant 1.000000e+00 : f32
    %8 = vector.broadcast %cst_6 : f32 to vector<16x1xf32>
    %9 = arith.addf %8, %7 : vector<16x1xf32>
    %10 = arith.divf %8, %9 : vector<16x1xf32>
    %c0_7 = arith.constant 0 : index
    %c0_8 = arith.constant 0 : index
    %11 = vector.load %arg7[%c0_7, %c0_8] : memref<16x16xf32, #tpu.memory_space<vmem>>, vector<16x16xf32>
    %cst_9 = arith.constant dense<0.000000e+00> : vector<16x1xf32>
    %12 = tpu.matmul %11, %10, %cst_9 {dimension_numbers = #tpu.dot_dimension_numbers<[1], [0], [0], [1], [0, 0, 1, 1], [], []>} : vector<16x16xf32>, vector<16x1xf32>, vector<16x1xf32> -> vector<16x1xf32>
    %13 = vector.extract_strided_slice %12 {offsets = [0, 0], sizes = [8, 1], strides = [1, 1]} : vector<16x1xf32> to vector<8x1xf32>
    %cst_10 = arith.constant 0.000000e+00 : f32
    %14 = vector.broadcast %cst_10 : f32 to vector<8x1xf32>
    %15 = arith.maximumf %14, %13 : vector<8x1xf32>
    %16 = vector.broadcast %cst_10 : f32 to vector<8x1xf32>
    %17 = arith.subf %16, %13 : vector<8x1xf32>
    %18 = arith.cmpf one, %17, %17 : vector<8x1xf32>
    %19 = vector.broadcast %cst_10 : f32 to vector<8x1xf32>
    %20 = arith.addf %19, %13 : vector<8x1xf32>
    %21 = math.absf %17 : vector<8x1xf32>
    %cst_11 = arith.constant 0.000000e+00 : f32
    %22 = vector.broadcast %cst_11 : f32 to vector<8x1xf32>
    %23 = arith.subf %22, %21 : vector<8x1xf32>
    %24 = math.exp %23 : vector<8x1xf32>
    %25 = math.log1p %24 : vector<8x1xf32>
    %26 = arith.addf %15, %25 : vector<8x1xf32>
    %27 = arith.select %18, %20, %26 : vector<8x1xi1>, vector<8x1xf32>
    %28 = vector.extract_strided_slice %12 {offsets = [8, 0], sizes = [8, 1], strides = [1, 1]} : vector<16x1xf32> to vector<8x1xf32>
    %c0_12 = arith.constant 0 : index
    %c0_13 = arith.constant 0 : index
    %c0_14 = arith.constant 0 : index
    %29 = vector.load %arg1[%c0_12, %c0_13, %c0_14] : memref<1x4x360xf32, #tpu.memory_space<vmem>>, vector<1x4x360xf32>
    %30 = vector.shape_cast %29 : vector<1x4x360xf32> to vector<4x360xf32>
    %cst_15 = arith.constant 0.000000e+00 : f32
    %31 = vector.broadcast %cst_15 : f32 to vector<8x288xf32>
    %c0_16 = arith.constant 0 : index
    %c0_17 = arith.constant 0 : index
    %c0_18 = arith.constant 0 : index
    %32 = vector.load %arg2[%c0_16, %c0_17, %c0_18] : memref<9x8x4xf32, #tpu.memory_space<vmem>>, vector<1x8x4xf32>
    %33 = vector.shape_cast %32 : vector<1x8x4xf32> to vector<8x4xf32>
    %34 = vector.extract_strided_slice %30 {offsets = [0, 0], sizes = [4, 288], strides = [1, 1]} : vector<4x360xf32> to vector<4x288xf32>
    %cst_19 = arith.constant dense<0.000000e+00> : vector<8x288xf32>
    %35 = tpu.matmul %33, %34, %cst_19 {dimension_numbers = #tpu.dot_dimension_numbers<[1], [0], [0], [1], [0, 0, 1, 1], [], []>} : vector<8x4xf32>, vector<4x288xf32>, vector<8x288xf32> -> vector<8x288xf32>
    %36 = arith.addf %31, %35 : vector<8x288xf32>
    %c1 = arith.constant 1 : index
    %c0_20 = arith.constant 0 : index
    %c0_21 = arith.constant 0 : index
    %37 = vector.load %arg2[%c1, %c0_20, %c0_21] : memref<9x8x4xf32, #tpu.memory_space<vmem>>, vector<1x8x4xf32>
    %38 = vector.shape_cast %37 : vector<1x8x4xf32> to vector<8x4xf32>
    %39 = vector.extract_strided_slice %30 {offsets = [0, 1], sizes = [4, 288], strides = [1, 1]} : vector<4x360xf32> to vector<4x288xf32>
    %cst_22 = arith.constant dense<0.000000e+00> : vector<8x288xf32>
    %40 = tpu.matmul %38, %39, %cst_22 {dimension_numbers = #tpu.dot_dimension_numbers<[1], [0], [0], [1], [0, 0, 1, 1], [], []>} : vector<8x4xf32>, vector<4x288xf32>, vector<8x288xf32> -> vector<8x288xf32>
    %41 = arith.addf %36, %40 : vector<8x288xf32>
    %c2 = arith.constant 2 : index
    %c0_23 = arith.constant 0 : index
    %c0_24 = arith.constant 0 : index
    %42 = vector.load %arg2[%c2, %c0_23, %c0_24] : memref<9x8x4xf32, #tpu.memory_space<vmem>>, vector<1x8x4xf32>
    %43 = vector.shape_cast %42 : vector<1x8x4xf32> to vector<8x4xf32>
    %44 = vector.extract_strided_slice %30 {offsets = [0, 2], sizes = [4, 288], strides = [1, 1]} : vector<4x360xf32> to vector<4x288xf32>
    %cst_25 = arith.constant dense<0.000000e+00> : vector<8x288xf32>
    %45 = tpu.matmul %43, %44, %cst_25 {dimension_numbers = #tpu.dot_dimension_numbers<[1], [0], [0], [1], [0, 0, 1, 1], [], []>} : vector<8x4xf32>, vector<4x288xf32>, vector<8x288xf32> -> vector<8x288xf32>
    %46 = arith.addf %41, %45 : vector<8x288xf32>
    %c3 = arith.constant 3 : index
    %c0_26 = arith.constant 0 : index
    %c0_27 = arith.constant 0 : index
    %47 = vector.load %arg2[%c3, %c0_26, %c0_27] : memref<9x8x4xf32, #tpu.memory_space<vmem>>, vector<1x8x4xf32>
    %48 = vector.shape_cast %47 : vector<1x8x4xf32> to vector<8x4xf32>
    %49 = vector.extract_strided_slice %30 {offsets = [0, 18], sizes = [4, 288], strides = [1, 1]} : vector<4x360xf32> to vector<4x288xf32>
    %cst_28 = arith.constant dense<0.000000e+00> : vector<8x288xf32>
    %50 = tpu.matmul %48, %49, %cst_28 {dimension_numbers = #tpu.dot_dimension_numbers<[1], [0], [0], [1], [0, 0, 1, 1], [], []>} : vector<8x4xf32>, vector<4x288xf32>, vector<8x288xf32> -> vector<8x288xf32>
    %51 = arith.addf %46, %50 : vector<8x288xf32>
    %c4 = arith.constant 4 : index
    %c0_29 = arith.constant 0 : index
    %c0_30 = arith.constant 0 : index
    %52 = vector.load %arg2[%c4, %c0_29, %c0_30] : memref<9x8x4xf32, #tpu.memory_space<vmem>>, vector<1x8x4xf32>
    %53 = vector.shape_cast %52 : vector<1x8x4xf32> to vector<8x4xf32>
    %54 = vector.extract_strided_slice %30 {offsets = [0, 19], sizes = [4, 288], strides = [1, 1]} : vector<4x360xf32> to vector<4x288xf32>
    %cst_31 = arith.constant dense<0.000000e+00> : vector<8x288xf32>
    %55 = tpu.matmul %53, %54, %cst_31 {dimension_numbers = #tpu.dot_dimension_numbers<[1], [0], [0], [1], [0, 0, 1, 1], [], []>} : vector<8x4xf32>, vector<4x288xf32>, vector<8x288xf32> -> vector<8x288xf32>
    %56 = arith.addf %51, %55 : vector<8x288xf32>
    %c5 = arith.constant 5 : index
    %c0_32 = arith.constant 0 : index
    %c0_33 = arith.constant 0 : index
    %57 = vector.load %arg2[%c5, %c0_32, %c0_33] : memref<9x8x4xf32, #tpu.memory_space<vmem>>, vector<1x8x4xf32>
    %58 = vector.shape_cast %57 : vector<1x8x4xf32> to vector<8x4xf32>
    %59 = vector.extract_strided_slice %30 {offsets = [0, 20], sizes = [4, 288], strides = [1, 1]} : vector<4x360xf32> to vector<4x288xf32>
    %cst_34 = arith.constant dense<0.000000e+00> : vector<8x288xf32>
    %60 = tpu.matmul %58, %59, %cst_34 {dimension_numbers = #tpu.dot_dimension_numbers<[1], [0], [0], [1], [0, 0, 1, 1], [], []>} : vector<8x4xf32>, vector<4x288xf32>, vector<8x288xf32> -> vector<8x288xf32>
    %61 = arith.addf %56, %60 : vector<8x288xf32>
    %c6 = arith.constant 6 : index
    %c0_35 = arith.constant 0 : index
    %c0_36 = arith.constant 0 : index
    %62 = vector.load %arg2[%c6, %c0_35, %c0_36] : memref<9x8x4xf32, #tpu.memory_space<vmem>>, vector<1x8x4xf32>
    %63 = vector.shape_cast %62 : vector<1x8x4xf32> to vector<8x4xf32>
    %64 = vector.extract_strided_slice %30 {offsets = [0, 36], sizes = [4, 288], strides = [1, 1]} : vector<4x360xf32> to vector<4x288xf32>
    %cst_37 = arith.constant dense<0.000000e+00> : vector<8x288xf32>
    %65 = tpu.matmul %63, %64, %cst_37 {dimension_numbers = #tpu.dot_dimension_numbers<[1], [0], [0], [1], [0, 0, 1, 1], [], []>} : vector<8x4xf32>, vector<4x288xf32>, vector<8x288xf32> -> vector<8x288xf32>
    %66 = arith.addf %61, %65 : vector<8x288xf32>
    %c7 = arith.constant 7 : index
    %c0_38 = arith.constant 0 : index
    %c0_39 = arith.constant 0 : index
    %67 = vector.load %arg2[%c7, %c0_38, %c0_39] : memref<9x8x4xf32, #tpu.memory_space<vmem>>, vector<1x8x4xf32>
    %68 = vector.shape_cast %67 : vector<1x8x4xf32> to vector<8x4xf32>
    %69 = vector.extract_strided_slice %30 {offsets = [0, 37], sizes = [4, 288], strides = [1, 1]} : vector<4x360xf32> to vector<4x288xf32>
    %cst_40 = arith.constant dense<0.000000e+00> : vector<8x288xf32>
    %70 = tpu.matmul %68, %69, %cst_40 {dimension_numbers = #tpu.dot_dimension_numbers<[1], [0], [0], [1], [0, 0, 1, 1], [], []>} : vector<8x4xf32>, vector<4x288xf32>, vector<8x288xf32> -> vector<8x288xf32>
    %71 = arith.addf %66, %70 : vector<8x288xf32>
    %c8 = arith.constant 8 : index
    %c0_41 = arith.constant 0 : index
    %c0_42 = arith.constant 0 : index
    %72 = vector.load %arg2[%c8, %c0_41, %c0_42] : memref<9x8x4xf32, #tpu.memory_space<vmem>>, vector<1x8x4xf32>
    %73 = vector.shape_cast %72 : vector<1x8x4xf32> to vector<8x4xf32>
    %74 = vector.extract_strided_slice %30 {offsets = [0, 38], sizes = [4, 288], strides = [1, 1]} : vector<4x360xf32> to vector<4x288xf32>
    %cst_43 = arith.constant dense<0.000000e+00> : vector<8x288xf32>
    %75 = tpu.matmul %73, %74, %cst_43 {dimension_numbers = #tpu.dot_dimension_numbers<[1], [0], [0], [1], [0, 0, 1, 1], [], []>} : vector<8x4xf32>, vector<4x288xf32>, vector<8x288xf32> -> vector<8x288xf32>
    %76 = arith.addf %71, %75 : vector<8x288xf32>
    %c0_44 = arith.constant 0 : index
    %c0_45 = arith.constant 0 : index
    %77 = vector.load %arg3[%c0_44, %c0_45] : memref<8x1xf32, #tpu.memory_space<vmem>>, vector<8x1xf32>
    %78 = vector.broadcast %77 : vector<8x1xf32> to vector<8x288xf32>
    %79 = arith.addf %76, %78 : vector<8x288xf32>
    %80 = vector.broadcast %27 : vector<8x1xf32> to vector<8x288xf32>
    %81 = arith.mulf %79, %80 : vector<8x288xf32>
    %82 = vector.broadcast %28 : vector<8x1xf32> to vector<8x288xf32>
    %83 = arith.addf %81, %82 : vector<8x288xf32>
    %c0_46 = arith.constant 0 : index
    %c0_47 = arith.constant 0 : index
    %c0_48 = arith.constant 0 : index
    %84 = vector.load %arg8[%c0_46, %c0_47, %c0_48] : memref<1x8x288xf32, #tpu.memory_space<vmem>>, vector<1x8x288xf32>
    %85 = vector.shape_cast %84 : vector<1x8x288xf32> to vector<8x288xf32>
    %86 = vector.shape_cast %83 : vector<8x288xf32> to vector<1x8x288xf32>
    tpu.vector_store %arg8[%c0_46, %c0_47, %c0_48], %86 {strides = array<i32>} : memref<1x8x288xf32, #tpu.memory_space<vmem>>, vector<1x8x288xf32>,
    return
  }
  func.func @transform_0(%arg0: i32) -> (i32, i32, i32) {
    %c0_i32 = arith.constant 0 : i32
    %c0_i32_0 = arith.constant 0 : i32
    %c0_i32_1 = arith.constant 0 : i32
    return %arg0, %c0_i32, %c0_i32_0 : i32, i32, i32
  }
  func.func @transform_1(%arg0: i32) -> (i32, i32, i32) {
    %c0_i32 = arith.constant 0 : i32
    %c0_i32_0 = arith.constant 0 : i32
    %c0_i32_1 = arith.constant 0 : i32
    %c0_i32_2 = arith.constant 0 : i32
    return %c0_i32, %c0_i32_0, %c0_i32_1 : i32, i32, i32
  }
  func.func @transform_2(%arg0: i32) -> (i32, i32) {
    %c0_i32 = arith.constant 0 : i32
    %c0_i32_0 = arith.constant 0 : i32
    %c0_i32_1 = arith.constant 0 : i32
    return %c0_i32, %c0_i32_0 : i32, i32
  }
  func.func @transform_3(%arg0: i32) -> (i32, i32, i32) {
    %c0_i32 = arith.constant 0 : i32
    %c0_i32_0 = arith.constant 0 : i32
    %c0_i32_1 = arith.constant 0 : i32
    return %arg0, %c0_i32, %c0_i32_0 : i32, i32, i32
  }
  func.func @transform_4(%arg0: i32) -> (i32, i32) {
    %c0_i32 = arith.constant 0 : i32
    %c0_i32_0 = arith.constant 0 : i32
    %c0_i32_1 = arith.constant 0 : i32
    return %c0_i32, %c0_i32_0 : i32, i32
  }
  func.func @transform_5(%arg0: i32) -> (i32, i32) {
    %c0_i32 = arith.constant 0 : i32
    %c0_i32_0 = arith.constant 0 : i32
    %c0_i32_1 = arith.constant 0 : i32
    return %c0_i32, %c0_i32_0 : i32, i32
  }
  func.func @transform_6(%arg0: i32) -> (i32, i32) {
    %c0_i32 = arith.constant 0 : i32
    %c0_i32_0 = arith.constant 0 : i32
    %c0_i32_1 = arith.constant 0 : i32
    return %c0_i32, %c0_i32_0 : i32, i32
  }
  func.func @transform_7(%arg0: i32) -> (i32, i32, i32) {
    %c0_i32 = arith.constant 0 : i32
    %c0_i32_0 = arith.constant 0 : i32
    %c0_i32_1 = arith.constant 0 : i32
    return %arg0, %c0_i32, %c0_i32_0 : i32, i32, i32
  }
}

</mosaic_0001>

<llo_original>
// kernel: tpu_custom_call.1
$region0: #{tpu_custom_call.1}
  #allocation0 [shape = 'u32[]', space=smem, size = 0x4, offset = 0x4, fixed_abs, tag = 'smem constant byte address 0x4 - core index']
  #allocation1 [shape = 'u32[144,128]{1,0:T(1,128)}', space=vmem, size = 0x12000, scoped, tag = 'internal scratch']
  %s0 = inlined_call_operand.vmem [shape: f32[2,4,360], index: 0, kind: input, shape index: {}]
  %s1 = inlined_call_operand.vmem [shape: f32[9,8,4], index: 1, kind: input, shape index: {}]
  %s2 = inlined_call_operand.vmem [shape: f32[8,1], index: 2, kind: input, shape index: {}]
  %s3 = inlined_call_operand.vmem [shape: f32[2,1,1], index: 3, kind: input, shape index: {}]
  %s4 = inlined_call_operand.vmem [shape: f32[16,1], index: 4, kind: input, shape index: {}]
  %s5 = inlined_call_operand.vmem [shape: f32[16,1], index: 5, kind: input, shape index: {}]
  %s6 = inlined_call_operand.vmem [shape: f32[16,16], index: 6, kind: input, shape index: {}]
  %s7 = inlined_call_operand.hbm [shape: f32[2,8,288], index: 7, kind: output, shape index: {}]
  %s8 = sld [smem:[#allocation0]]
  $region61: #{tpu_custom_call.1} parent=0
    _
  %s10 = ssub.s32 1, %s8
  %s11 = scalar_select 0, %s10, %s8
  $region1: #{tpu_custom_call.1} parent=0
    #allocation2 [shape = 'u8[24576]{0}', space=vmem, size = 0x6000, scoped, tag = 'output window, operand 0']
    #allocation3 [shape = 's32[2]{0}', space=sflag, size = 0x8, scoped, tag = 'scoped memory for tpu_custom_call.1']
    %12 = vsyncpa [#allocation3], 0
    %s13 = scalar_lea.sflag [#allocation3], 1
    %14 = vsyncpa %s13, 0
    loop: start=0, step=1, limit=4
    $region2: #{tpu_custom_call.1} parent=1 // loop_pre_header
      _
    $region3: #{tpu_custom_call.1} parent=1 // loop_header
      %s16 = sphi 0, %s20
      %p17 = scmp.ge.s32.totalorder %s16, 4
      %s26 = sphi 0, %s28
      %s29 = sphi 0, %s26
      %s30 = sphi 0, %s29
      %s46 = sphi 0, %s30
      %s50 = sphi 0, %s50
      %s52 = sphi 0, %s50
      %s53 = sphi 0, %s52
      %s67 = sphi 0, %s53
      %s71 = sphi 0, %s71
      %s73 = sphi 0, %s71
      %s74 = sphi 0, %s73
      %s88 = sphi 0, %s74
      %s94 = sphi 0, %s96
      %s97 = sphi 0, %s94
      %s98 = sphi 0, %s97
      %s114 = sphi 0, %s98
      %s118 = sphi 0, %s118
      %s120 = sphi 0, %s118
      %s121 = sphi 0, %s120
      %s135 = sphi 0, %s121
      %s139 = sphi 0, %s139
      %s141 = sphi 0, %s139
      %s142 = sphi 0, %s141
      %s156 = sphi 0, %s142
      %s160 = sphi 0, %s160
      %s162 = sphi 0, %s160
      %s163 = sphi 0, %s162
      %s177 = sphi 0, %s163
      %s183 = sphi 0, %s185
      %s186 = sphi 0, %s183
      %s187 = sphi 0, %s186
      %s203 = sphi 0, %s187
    $region4: #{tpu_custom_call.1} parent=1 // loop_header_branch
      %19 = sbr.rel (%p17) target = $region8
    $region5: #{tpu_custom_call.1} parent=1 // loop_body
      %s21 = ssub.s32 %s16, 1
      %s22 = ssub.s32 %s16, 2
      %s23 = sadd.s32 %s16, 1
      %s24 = ssub.s32 %s16, %s23
      %p25 = scmp.eq.s32.totalorder %s24, 0
      %s27 = sadd.s32 %s26, 1
      %s28 = scalar_select %p25, %s26, %s27
      %p31 = pneg %p25
      %p32 = scmp.eq.s32.totalorder %s16, 1
      %p33 = por %p31, %p32
      %p34 = scmp.ne.s32.totalorder %s26, %s29
      %p35 = scmp.eq.s32.totalorder %s16, 0
      %p36 = por %p34, %p35
      %p37 = scmp.ne.s32.totalorder %s26, %s29
      %p38 = scmp.eq.s32.totalorder %s21, 1
      %p39 = por %p37, %p38
      %p40 = scmp.ne.s32.totalorder %s29, %s30
      %p41 = scmp.eq.s32.totalorder %s21, 0
      %p42 = por %p40, %p41
      %p43 = scmp.ne.s32.totalorder %s29, %s30
      %p44 = scmp.eq.s32.totalorder %s22, 1
      %p45 = por %p43, %p44
      %p47 = scmp.ne.s32.totalorder %s30, %s46
      %p48 = scmp.eq.s32.totalorder %s22, 0
      %p49 = por %p47, %p48
      %s51 = sadd.s32 %s50, 1
      %p54 = scmp.eq.s32.totalorder %s16, 1
      %p55 = scmp.ne.s32.totalorder %s50, %s52
      %p56 = scmp.eq.s32.totalorder %s16, 0
      %p57 = por %p55, %p56
      %p58 = scmp.ne.s32.totalorder %s50, %s52
      %p59 = scmp.eq.s32.totalorder %s21, 1
      %p60 = por %p58, %p59
      %p61 = scmp.ne.s32.totalorder %s52, %s53
      %p62 = scmp.eq.s32.totalorder %s21, 0
      %p63 = por %p61, %p62
      %p64 = scmp.ne.s32.totalorder %s52, %s53
      %p65 = scmp.eq.s32.totalorder %s22, 1
      %p66 = por %p64, %p65
      %p68 = scmp.ne.s32.totalorder %s53, %s67
      %p69 = scmp.eq.s32.totalorder %s22, 0
      %p70 = por %p68, %p69
      %s72 = sadd.s32 %s71, 1
      %p75 = scmp.eq.s32.totalorder %s16, 1
      %p76 = scmp.ne.s32.totalorder %s71, %s73
      %p77 = scmp.eq.s32.totalorder %s16, 0
      %p78 = por %p76, %p77
      %p79 = scmp.ne.s32.totalorder %s71, %s73
      %p80 = scmp.eq.s32.totalorder %s21, 1
      %p81 = por %p79, %p80
      %p82 = scmp.ne.s32.totalorder %s73, %s74
      %p83 = scmp.eq.s32.totalorder %s21, 0
      %p84 = por %p82, %p83
      %p85 = scmp.ne.s32.totalorder %s73, %s74
      %p86 = scmp.eq.s32.totalorder %s22, 1
      %p87 = por %p85, %p86
      %p89 = scmp.ne.s32.totalorder %s74, %s88
      %p90 = scmp.eq.s32.totalorder %s22, 0
      %p91 = por %p89, %p90
      %s92 = ssub.s32 %s16, %s23
      %p93 = scmp.eq.s32.totalorder %s92, 0
      %s95 = sadd.s32 %s94, 1
      %s96 = scalar_select %p93, %s94, %s95
      %p99 = pneg %p93
      %p100 = scmp.eq.s32.totalorder %s16, 1
      %p101 = por %p99, %p100
      %p102 = scmp.ne.s32.totalorder %s94, %s97
      %p103 = scmp.eq.s32.totalorder %s16, 0
      %p104 = por %p102, %p103
      %p105 = scmp.ne.s32.totalorder %s94, %s97
      %p106 = scmp.eq.s32.totalorder %s21, 1
      %p107 = por %p105, %p106
      %p108 = scmp.ne.s32.totalorder %s97, %s98
      %p109 = scmp.eq.s32.totalorder %s21, 0
      %p110 = por %p108, %p109
      %p111 = scmp.ne.s32.totalorder %s97, %s98
      %p112 = scmp.eq.s32.totalorder %s22, 1
      %p113 = por %p111, %p112
      %p115 = scmp.ne.s32.totalorder %s98, %s114
      %p116 = scmp.eq.s32.totalorder %s22, 0
      %p117 = por %p115, %p116
      %s119 = sadd.s32 %s118, 1
      %p122 = scmp.eq.s32.totalorder %s16, 1
      %p123 = scmp.ne.s32.totalorder %s118, %s120
      %p124 = scmp.eq.s32.totalorder %s16, 0
      %p125 = por %p123, %p124
      %p126 = scmp.ne.s32.totalorder %s118, %s120
      %p127 = scmp.eq.s32.totalorder %s21, 1
      %p128 = por %p126, %p127
      %p129 = scmp.ne.s32.totalorder %s120, %s121
      %p130 = scmp.eq.s32.totalorder %s21, 0
      %p131 = por %p129, %p130
      %p132 = scmp.ne.s32.totalorder %s120, %s121
      %p133 = scmp.eq.s32.totalorder %s22, 1
      %p134 = por %p132, %p133
      %p136 = scmp.ne.s32.totalorder %s121, %s135
      %p137 = scmp.eq.s32.totalorder %s22, 0
      %p138 = por %p136, %p137
      %s140 = sadd.s32 %s139, 1
      %p143 = scmp.eq.s32.totalorder %s16, 1
      %p144 = scmp.ne.s32.totalorder %s139, %s141
      %p145 = scmp.eq.s32.totalorder %s16, 0
      %p146 = por %p144, %p145
      %p147 = scmp.ne.s32.totalorder %s139, %s141
      %p148 = scmp.eq.s32.totalorder %s21, 1
      %p149 = por %p147, %p148
      %p150 = scmp.ne.s32.totalorder %s141, %s142
      %p151 = scmp.eq.s32.totalorder %s21, 0
      %p152 = por %p150, %p151
      %p153 = scmp.ne.s32.totalorder %s141, %s142
      %p154 = scmp.eq.s32.totalorder %s22, 1
      %p155 = por %p153, %p154
      %p157 = scmp.ne.s32.totalorder %s142, %s156
      %p158 = scmp.eq.s32.totalorder %s22, 0
      %p159 = por %p157, %p158
      %s161 = sadd.s32 %s160, 1
      %p164 = scmp.eq.s32.totalorder %s16, 1
      %p165 = scmp.ne.s32.totalorder %s160, %s162
      %p166 = scmp.eq.s32.totalorder %s16, 0
      %p167 = por %p165, %p166
      %p168 = scmp.ne.s32.totalorder %s160, %s162
      %p169 = scmp.eq.s32.totalorder %s21, 1
      %p170 = por %p168, %p169
      %p171 = scmp.ne.s32.totalorder %s162, %s163
      %p172 = scmp.eq.s32.totalorder %s21, 0
      %p173 = por %p171, %p172
      %p174 = scmp.ne.s32.totalorder %s162, %s163
      %p175 = scmp.eq.s32.totalorder %s22, 1
      %p176 = por %p174, %p175
      %p178 = scmp.ne.s32.totalorder %s163, %s177
      %p179 = scmp.eq.s32.totalorder %s22, 0
      %p180 = por %p178, %p179
      %s181 = ssub.s32 %s16, %s23
      %p182 = scmp.eq.s32.totalorder %s181, 0
      %s184 = sadd.s32 %s183, 1
      %s185 = scalar_select %p182, %s183, %s184
      %p188 = pneg %p182
      %p189 = scmp.eq.s32.totalorder %s16, 1
      %p190 = por %p188, %p189
      %p191 = scmp.ne.s32.totalorder %s183, %s186
      %p192 = scmp.eq.s32.totalorder %s16, 0
      %p193 = por %p191, %p192
      %p194 = scmp.ne.s32.totalorder %s183, %s186
      %p195 = scmp.eq.s32.totalorder %s21, 1
      %p196 = por %p194, %p195
      %p197 = scmp.ne.s32.totalorder %s186, %s187
      %p198 = scmp.eq.s32.totalorder %s21, 0
      %p199 = por %p197, %p198
      %p200 = scmp.ne.s32.totalorder %s186, %s187
      %p201 = scmp.eq.s32.totalorder %s22, 1
      %p202 = por %p200, %p201
      %p204 = scmp.ne.s32.totalorder %s187, %s203
      %p205 = scmp.eq.s32.totalorder %s22, 0
      %p206 = por %p204, %p205
      %p207 = scmp.le.s32.totalorder 1, %s16
      %p208 = scmp.lt.s32.totalorder %s16, 3
      %p209 = pnand %p207, %p208
      %p210 = pneg %p209
      // Predicated region
      $region9: #{tpu_custom_call.1} parent=5 // pred_check
        _
      $region10: #{tpu_custom_call.1} parent=5 // pred_check_branch
        %212 = sbr.rel (%p209) target = $region12
      $region11: #{tpu_custom_call.1} parent=5 // pred_region
        %s213 = ssub.s32 %s16, 1
        // Predicated region
        $region13: #{tpu_custom_call.1} parent=11 // pred_check
          %p214 = pneg %p63
        $region14: #{tpu_custom_call.1} parent=11 // pred_check_branch
          %216 = sbr.rel (%p214) target = $region16
        $region15: #{tpu_custom_call.1} parent=11 // pred_region
          _
        $region16: #{tpu_custom_call.1} parent=11 // pred_fallthru
          _
        // Predicated region
        $region17: #{tpu_custom_call.1} parent=11 // pred_check
          %p217 = pneg %p84
        $region18: #{tpu_custom_call.1} parent=11 // pred_check_branch
          %219 = sbr.rel (%p217) target = $region20
        $region19: #{tpu_custom_call.1} parent=11 // pred_region
          _
        $region20: #{tpu_custom_call.1} parent=11 // pred_fallthru
          _
        // Predicated region
        $region21: #{tpu_custom_call.1} parent=11 // pred_check
          %p220 = pneg %p131
        $region22: #{tpu_custom_call.1} parent=11 // pred_check_branch
          %222 = sbr.rel (%p220) target = $region24
        $region23: #{tpu_custom_call.1} parent=11 // pred_region
          _
        $region24: #{tpu_custom_call.1} parent=11 // pred_fallthru
          _
        // Predicated region
        $region25: #{tpu_custom_call.1} parent=11 // pred_check
          %p223 = pneg %p152
        $region26: #{tpu_custom_call.1} parent=11 // pred_check_branch
          %225 = sbr.rel (%p223) target = $region28
        $region27: #{tpu_custom_call.1} parent=11 // pred_region
          _
        $region28: #{tpu_custom_call.1} parent=11 // pred_fallthru
          _
        // Predicated region
        $region29: #{tpu_custom_call.1} parent=11 // pred_check
          %p226 = pneg %p173
        $region30: #{tpu_custom_call.1} parent=11 // pred_check_branch
          %228 = sbr.rel (%p226) target = $region32
        $region31: #{tpu_custom_call.1} parent=11 // pred_region
          _
        $region32: #{tpu_custom_call.1} parent=11 // pred_fallthru
          _
      $region12: #{tpu_custom_call.1} parent=5 // pred_fallthru
        _
      %p229 = scmp.lt.s32.totalorder %s16, 2
      // Predicated region
      $region33: #{tpu_custom_call.1} parent=5 // pred_check
        %p230 = pneg %p229
      $region34: #{tpu_custom_call.1} parent=5 // pred_check_branch
        %232 = sbr.rel (%p230) target = $region36
      $region35: #{tpu_custom_call.1} parent=5 // pred_region
        // Predicated region
        $region37: #{tpu_custom_call.1} parent=35 // pred_check
          %p233 = pneg %p36
        $region38: #{tpu_custom_call.1} parent=35 // pred_check_branch
          %235 = sbr.rel (%p233) target = $region40
        $region39: #{tpu_custom_call.1} parent=35 // pred_region
          %p236 = scmp.lt.s32.totalorder %s16, 1
          %s237 = scalar_select %p236, %s16, 1
          %s238 = smul.addr %s237, 3
          %s239 = smul.addr %s238, 4
          %s240 = scalar_lea.vmem %s0, %s239
        $region40: #{tpu_custom_call.1} parent=35 // pred_fallthru
          _
        // Predicated region
        $region41: #{tpu_custom_call.1} parent=35 // pred_check
          %p241 = pneg %p104
        $region42: #{tpu_custom_call.1} parent=35 // pred_check_branch
          %243 = sbr.rel (%p241) target = $region44
        $region43: #{tpu_custom_call.1} parent=35 // pred_region
          %p244 = scmp.lt.s32.totalorder %s16, 1
          %s245 = scalar_select %p244, %s16, 1
          %s246 = scalar_lea.vmem %s3, %s245
        $region44: #{tpu_custom_call.1} parent=35 // pred_fallthru
          _
      $region36: #{tpu_custom_call.1} parent=5 // pred_fallthru
        _
      %p247 = scmp.le.s32.totalorder 1, %s16
      %p248 = scmp.lt.s32.totalorder %s16, 3
      %p249 = pnand %p247, %p248
      %p250 = pneg %p249
      // Predicated region
      $region45: #{tpu_custom_call.1} parent=5 // pred_check
        _
      $region46: #{tpu_custom_call.1} parent=5 // pred_check_branch
        %252 = sbr.rel (%p249) target = $region48
      $region47: #{tpu_custom_call.1} parent=5 // pred_region
        %s253 = ssub.s32 %s16, 1
        %p254 = scmp.lt.s32.totalorder %s21, 1
        %s255 = scalar_select %p254, %s21, 1
        %s256 = smul.addr %s255, 3
        %s257 = smul.addr %s256, 4
        %s258 = scalar_lea.vmem %s0, %s257
        %p259 = pneg %p42
        %p260 = pneg %p39
        %p261 = pneg %p63
        %p262 = pneg %p60
        %p263 = pneg %p84
        %p264 = pneg %p81
        %p265 = scmp.lt.s32.totalorder %s21, 1
        %s266 = scalar_select %p265, %s21, 1
        %s267 = scalar_lea.vmem %s3, %s266
        %p268 = pneg %p110
        %p269 = pneg %p107
        %p270 = pneg %p131
        %p271 = pneg %p128
        %p272 = pneg %p152
        %p273 = pneg %p149
        %p274 = pneg %p173
        %p275 = pneg %p170
        %p276 = pneg %p199
        %p277 = pneg %p196
        %s278 = sand.u32 %s186, 1
        %s279 = scalar_lea.sflag [#allocation3], %s278
        %s280 = sand.u32 %s186, 1
        %s281 = smul.addr %s280, 24
        %s282 = scalar_lea.vmem [#allocation2], %s281
        %p283 = scmp.lt.s32.totalorder %s21, 1
        %s284 = scalar_select %p283, %s21, 1
        %s285 = smul.addr %s284, 3
        %s286 = smul.addr %s285, 4
        %s287 = scalar_lea.vmem %s0, %s286
        %p288 = scmp.lt.s32.totalorder %s21, 1
        %s289 = scalar_select %p288, %s21, 1
        %s290 = scalar_lea.vmem %s3, %s289
        %v291 = vld [vmem:[%s4] sm:$0xff]
        %v292 = vld [vmem:[%s4 + $0x8] sm:$0xff]
        %v293 = vld [vmem:[%s290] sm:$0x1]
        %v294 = vld [vmem:[%s5] sm:$0xff]
        %v295 = vld [vmem:[%s5 + $0x8] sm:$0xff]
        %vm296 = vcmask 7168
        %v298 = vsel %vm296, %v291, 0
        %v301 = vsel %vm296, %v292, 0
        %vm303 = vcmask 1040384
        %v305 = vsel %vm303, %v293, 0
        %307 = vmatprep.subr.mxu0 0.0
        %308 = vmatpush1.msra.mxu0 %v305
        %309 = vmatprep.subr.mxu0 0.0
        %310 = vmatpush1.msra.mxu0 0.0
        %311 = vmatprep.subr.mxu0 0.0
        %312 = vmatpush1.msra.mxu0 0.0
        %313 = vmatprep.subr.mxu0 0.0
        %314 = vmatpush1.msra.mxu0 0.0
        %315 = vmatprep.subr.mxu0 0.0
        %316 = vmatpush1.msra.mxu0 0.0
        %317 = vmatprep.subr.mxu0 0.0
        %318 = vmatpush1.msra.mxu0 0.0
        %319 = vmatprep.subr.mxu0 0.0
        %320 = vmatpush1.msra.mxu0 0.0
        %321 = vmatprep.subr.mxu0 0.0
        %322 = vmatpush1.msra.mxu0 0.0
        %323 = vmatprep.subr.mxu0 0.0
        %324 = vmatpush1.msra.mxu0 0.0
        %325 = vmatprep.subr.mxu0 0.0
        %326 = vmatpush1.msra.mxu0 0.0
        %327 = vmatprep.subr.mxu0 0.0
        %328 = vmatpush1.msra.mxu0 0.0
        %329 = vmatprep.subr.mxu0 0.0
        %330 = vmatpush1.msra.mxu0 0.0
        %331 = vmatprep.subr.mxu0 0.0
        %332 = vmatpush1.msra.mxu0 0.0
        %333 = vmatprep.subr.mxu0 0.0
        %334 = vmatpush1.msra.mxu0 0.0
        %335 = vmatprep.subr.mxu0 0.0
        %336 = vmatpush1.msra.mxu0 0.0
        %337 = vmatprep.subr.mxu0 0.0
        %338 = vmatpush1.msra.mxu0 0.0
        %339 = vmatprep.subr.mxu0 0.0
        %340 = vmatpush1.msra.mxu0 0.0
        %341 = vmatprep.subr.mxu0 0.0
        %342 = vmatpush1.msra.mxu0 0.0
        %343 = vmatprep.subr.mxu0 0.0
        %344 = vmatpush1.msra.mxu0 0.0
        %345 = vmatprep.subr.mxu0 0.0
        %346 = vmatpush1.msra.mxu0 0.0
        %347 = vmatprep.subr.mxu0 0.0
        %348 = vmatpush1.msra.mxu0 0.0
        %349 = vmatprep.subr.mxu0 0.0
        %350 = vmatpush1.msra.mxu0 0.0
        %351 = vmatprep.subr.mxu0 0.0
        %352 = vmatpush1.msra.mxu0 0.0
        %353 = vmatprep.subr.mxu0 0.0
        %354 = vmatpush1.msra.mxu0 0.0
        %355 = vmatprep.subr.mxu0 0.0
        %356 = vmatpush1.msra.mxu0 0.0
        %357 = vmatprep.subr.mxu0 0.0
        %358 = vmatpush1.msra.mxu0 0.0
        %359 = vmatprep.subr.mxu0 0.0
        %360 = vmatpush1.msra.mxu0 0.0
        %361 = vmatprep.subr.mxu0 0.0
        %362 = vmatpush1.msra.mxu0 0.0
        %363 = vmatprep.subr.mxu0 0.0
        %364 = vmatpush1.msra.mxu0 0.0
        %365 = vmatprep.subr.mxu0 0.0
        %366 = vmatpush1.msra.mxu0 0.0
        %367 = vmatprep.subr.mxu0 0.0
        %368 = vmatpush1.msra.mxu0 0.0
        %369 = vmatprep.subr.mxu0 0.0
        %370 = vmatpush1.msra.mxu0 0.0
        %371 = vmatprep.mubr.f32.mxu0 0.0
        %372 = vmatmul.mubr.f32.gmra.mrb[0].mxu0 %v298
        %v373 = vpop.f32.mrb[0].mxu0
        %v374 = vadd.f32 %v294, %v373
        %v375 = vpop.f32.mrb[0].mxu0
        %376 = vmatprep.mubr.f32.mxu0 0.0
        %377 = vmatmul.mubr.f32.gmra.mrb[0].mxu0 %v301
        %v378 = vpop.f32.mrb[0].mxu0
        %v379 = vadd.f32 %v295, %v378
        %v380 = vpop.f32.mrb[0].mxu0
        %381 = vdwg.mxu0
        %v382 = vxor.u32 %v374, 2147483648
        %v383 = vxor.u32 %v379, 2147483648
        %v384 = vmul.f32 %v382, 1.442695
        %v385 = vpow.pop %v384
        %v386 = vmul.f32 %v383, 1.442695
        %v387 = vpow.pop %v386
        %v388 = vadd.f32 %v385, 1.0
        %v389 = vadd.f32 %v387, 1.0
        %v390 = vrcp.pop %v388
        %v391 = vmul.f32 1.0, %v390
        %v392 = vrcp.pop %v389
        %v393 = vmul.f32 1.0, %v392
        %v394 = vld [vmem:[%s6] sm:$0xff]
        %v395 = vld [vmem:[%s6 + $0x8] sm:$0xff]
        %vm396 = vcmask 130048
        %v398 = vsel %vm396, %v394, 0
        %v401 = vsel %vm396, %v395, 0
        %403 = vmatprep.subr.mxu0 0.0
        %404 = vmatpush1.msra.mxu0 %v391
        %405 = vmatprep.subr.mxu0 0.0
        %406 = vmatpush1.msra.mxu0 %v393
        %407 = vmatprep.subr.mxu0 0.0
        %408 = vmatpush1.msra.mxu0 0.0
        %409 = vmatprep.subr.mxu0 0.0
        %410 = vmatpush1.msra.mxu0 0.0
        %411 = vmatprep.subr.mxu0 0.0
        %412 = vmatpush1.msra.mxu0 0.0
        %413 = vmatprep.subr.mxu0 0.0
        %414 = vmatpush1.msra.mxu0 0.0
        %415 = vmatprep.subr.mxu0 0.0
        %416 = vmatpush1.msra.mxu0 0.0
        %417 = vmatprep.subr.mxu0 0.0
        %418 = vmatpush1.msra.mxu0 0.0
        %419 = vmatprep.subr.mxu0 0.0
        %420 = vmatpush1.msra.mxu0 0.0
        %421 = vmatprep.subr.mxu0 0.0
        %422 = vmatpush1.msra.mxu0 0.0
        %423 = vmatprep.subr.mxu0 0.0
        %424 = vmatpush1.msra.mxu0 0.0
        %425 = vmatprep.subr.mxu0 0.0
        %426 = vmatpush1.msra.mxu0 0.0
        %427 = vmatprep.subr.mxu0 0.0
        %428 = vmatpush1.msra.mxu0 0.0
        %429 = vmatprep.subr.mxu0 0.0
        %430 = vmatpush1.msra.mxu0 0.0
        %431 = vmatprep.subr.mxu0 0.0
        %432 = vmatpush1.msra.mxu0 0.0
        %433 = vmatprep.subr.mxu0 0.0
        %434 = vmatpush1.msra.mxu0 0.0
        %435 = vmatprep.subr.mxu0 0.0
        %436 = vmatpush1.msra.mxu0 0.0
        %437 = vmatprep.subr.mxu0 0.0
        %438 = vmatpush1.msra.mxu0 0.0
        %439 = vmatprep.subr.mxu0 0.0
        %440 = vmatpush1.msra.mxu0 0.0
        %441 = vmatprep.subr.mxu0 0.0
        %442 = vmatpush1.msra.mxu0 0.0
        %443 = vmatprep.subr.mxu0 0.0
        %444 = vmatpush1.msra.mxu0 0.0
        %445 = vmatprep.subr.mxu0 0.0
        %446 = vmatpush1.msra.mxu0 0.0
        %447 = vmatprep.subr.mxu0 0.0
        %448 = vmatpush1.msra.mxu0 0.0
        %449 = vmatprep.subr.mxu0 0.0
        %450 = vmatpush1.msra.mxu0 0.0
        %451 = vmatprep.subr.mxu0 0.0
        %452 = vmatpush1.msra.mxu0 0.0
        %453 = vmatprep.subr.mxu0 0.0
        %454 = vmatpush1.msra.mxu0 0.0
        %455 = vmatprep.subr.mxu0 0.0
        %456 = vmatpush1.msra.mxu0 0.0
        %457 = vmatprep.subr.mxu0 0.0
        %458 = vmatpush1.msra.mxu0 0.0
        %459 = vmatprep.subr.mxu0 0.0
        %460 = vmatpush1.msra.mxu0 0.0
        %461 = vmatprep.subr.mxu0 0.0
        %462 = vmatpush1.msra.mxu0 0.0
        %463 = vmatprep.subr.mxu0 0.0
        %464 = vmatpush1.msra.mxu0 0.0
        %465 = vmatprep.subr.mxu0 0.0
        %466 = vmatpush1.msra.mxu0 0.0
        %467 = vmatprep.mubr.f32.mxu0 0.0
        %468 = vmatmul.mubr.f32.gmra.mrb[0].mxu0 %v398
        %v469 = vpop.f32.mrb[0].mxu0
        %v470 = vadd.f32 0.0, %v469
        %v471 = vpop.f32.mrb[0].mxu0
        %472 = vmatprep.mubr.f32.mxu0 0.0
        %473 = vmatmul.mubr.f32.gmra.mrb[0].mxu0 %v401
        %v474 = vpop.f32.mrb[0].mxu0
        %v475 = vadd.f32 0.0, %v474
        %v476 = vpop.f32.mrb[0].mxu0
        %477 = vdwg.mxu0
        %v478 = vmax.f32 %v470, 0.0
        %v479 = vsub.f32 0.0, %v470
        %vm480 = vcmp.ne.f32.partialorder %v479, %v479
        %v481 = vadd.f32 %v470, 0.0
        %v482 = vand.u32 2147483647, %v479
        %v483 = vsub.f32 0.0, %v482
        %v484 = vmul.f32 %v483, 1.442695
        %v485 = vpow.pop %v484
        %v486 = vadd.f32 %v485, 1.0
        %v487 = vlog2.pop %v486
        %v488 = vmul.f32 %v487, 0.6931472
        %v489 = vmul.f32 -0.5, %v485
        %v490 = vadd.f32 %v489, 1.0
        %v491 = vmul.f32 %v490, %v485
        %v492 = vand.u32 2147483647, %v485
        %vm493 = vcmp.lt.f32.partialorder %v492, 0.0004427343
        %v494 = vsel %vm493, %v491, %v488
        %v495 = vadd.f32 %v478, %v494
        %v496 = vsel %vm480, %v481, %v495
        %v497 = vld [vmem:[%s287] sm:$0xff]
        %v498 = vld [vmem:[%s287 + $0x8] sm:$0xf]
        %v499 = vld [vmem:[%s1] sm:$0xff]
        %s500 = scalar_lea.vmem %s1, 8
        %v501 = vld [vmem:[%s500] sm:$0xff]
        %v504 = vcombine.high %v497, %v497
        %505 = vrot.lane.b32.xlu0 %v497, 127
        %v506 = vpop.permute.xlu0 %505
        %507 = vrot.lane.b32.xlu0 %v504, 127
        %v508 = vpop.permute.xlu0 %507
        %509 = vrot.lane.b32.xlu0 %v498, 127
        %v510 = vpop.permute.xlu0 %509
        %vm511 = vcmask 1039360
        %v512 = vsel %vm511, %v506, %v508
        %v513 = vsel %vm511, %v508, %v510
        %vm514 = vcmask 31744
        %v516 = vsel %vm514, %v501, 0
        %vm518 = vcmask 1043456
        %v519 = vsel %vm518, %v512, 0
        %v521 = vsel %vm518, %v513, 0
        %v523 = vsel %vm518, %v510, 0
        %525 = vmatprep.subr.mxu0 %v521
        %526 = vmatpush1.msra.mxu0 %v519
        %527 = vmatprep.subr.mxu0 0.0
        %528 = vmatpush1.msra.mxu0 0.0
        %529 = vmatprep.subr.mxu0 0.0
        %530 = vmatpush1.msra.mxu0 0.0
        %531 = vmatprep.subr.mxu0 0.0
        %532 = vmatpush1.msra.mxu0 0.0
        %533 = vmatprep.subr.mxu0 0.0
        %534 = vmatpush1.msra.mxu0 0.0
        %535 = vmatprep.subr.mxu0 0.0
        %536 = vmatpush1.msra.mxu0 0.0
        %537 = vmatprep.subr.mxu0 0.0
        %538 = vmatpush1.msra.mxu0 0.0
        %539 = vmatprep.subr.mxu0 0.0
        %540 = vmatpush1.msra.mxu0 0.0
        %541 = vmatprep.subr.mxu0 0.0
        %542 = vmatpush1.msra.mxu0 0.0
        %543 = vmatprep.subr.mxu0 0.0
        %544 = vmatpush1.msra.mxu0 0.0
        %545 = vmatprep.subr.mxu0 0.0
        %546 = vmatpush1.msra.mxu0 0.0
        %547 = vmatprep.subr.mxu0 0.0
        %548 = vmatpush1.msra.mxu0 0.0
        %549 = vmatprep.subr.mxu0 0.0
        %550 = vmatpush1.msra.mxu0 0.0
        %551 = vmatprep.subr.mxu0 0.0
        %552 = vmatpush1.msra.mxu0 0.0
        %553 = vmatprep.subr.mxu0 0.0
        %554 = vmatpush1.msra.mxu0 0.0
        %555 = vmatprep.subr.mxu0 0.0
        %556 = vmatpush1.msra.mxu0 0.0
        %557 = vmatprep.subr.mxu0 0.0
        %558 = vmatpush1.msra.mxu0 0.0
        %559 = vmatprep.subr.mxu0 0.0
        %560 = vmatpush1.msra.mxu0 0.0
        %561 = vmatprep.subr.mxu0 0.0
        %562 = vmatpush1.msra.mxu0 0.0
        %563 = vmatprep.subr.mxu0 0.0
        %564 = vmatpush1.msra.mxu0 0.0
        %565 = vmatprep.subr.mxu0 0.0
        %566 = vmatpush1.msra.mxu0 0.0
        %567 = vmatprep.subr.mxu0 0.0
        %568 = vmatpush1.msra.mxu0 0.0
        %569 = vmatprep.subr.mxu0 0.0
        %570 = vmatpush1.msra.mxu0 0.0
        %571 = vmatprep.subr.mxu0 0.0
        %572 = vmatpush1.msra.mxu0 0.0
        %573 = vmatprep.subr.mxu0 0.0
        %574 = vmatpush1.msra.mxu0 0.0
        %575 = vmatprep.subr.mxu0 0.0
        %576 = vmatpush1.msra.mxu0 0.0
        %577 = vmatprep.subr.mxu0 0.0
        %578 = vmatpush1.msra.mxu0 0.0
        %579 = vmatprep.subr.mxu0 0.0
        %580 = vmatpush1.msra.mxu0 0.0
        %581 = vmatprep.subr.mxu0 0.0
        %582 = vmatpush1.msra.mxu0 0.0
        %583 = vmatprep.subr.mxu0 0.0
        %584 = vmatpush1.msra.mxu0 0.0
        %585 = vmatprep.subr.mxu0 0.0
        %586 = vmatpush1.msra.mxu0 0.0
        %587 = vmatprep.subr.mxu0 0.0
        %588 = vmatpush1.msra.mxu0 0.0
        %589 = vmatprep.mubr.f32.mxu0 0.0
        %590 = vmatmul.mubr.f32.gmra.mrb[0].mxu0 %v516
        %v591 = vpop.f32.mrb[0].mxu0
        %v592 = vadd.f32 0.0, %v591
        %v593 = vpop.f32.mrb[0].mxu0
        %v594 = vadd.f32 0.0, %v593
        %595 = vdwg.mxu0
        %596 = vmatprep.subr.mxu0 0.0
        %597 = vmatpush1.msra.mxu0 %v523
        %598 = vmatprep.subr.mxu0 0.0
        %599 = vmatpush1.msra.mxu0 0.0
        %600 = vmatprep.subr.mxu0 0.0
        %601 = vmatpush1.msra.mxu0 0.0
        %602 = vmatprep.subr.mxu0 0.0
        %603 = vmatpush1.msra.mxu0 0.0
        %604 = vmatprep.subr.mxu0 0.0
        %605 = vmatpush1.msra.mxu0 0.0
        %606 = vmatprep.subr.mxu0 0.0
        %607 = vmatpush1.msra.mxu0 0.0
        %608 = vmatprep.subr.mxu0 0.0
        %609 = vmatpush1.msra.mxu0 0.0
        %610 = vmatprep.subr.mxu0 0.0
        %611 = vmatpush1.msra.mxu0 0.0
        %612 = vmatprep.subr.mxu0 0.0
        %613 = vmatpush1.msra.mxu0 0.0
        %614 = vmatprep.subr.mxu0 0.0
        %615 = vmatpush1.msra.mxu0 0.0
        %616 = vmatprep.subr.mxu0 0.0
        %617 = vmatpush1.msra.mxu0 0.0
        %618 = vmatprep.subr.mxu0 0.0
        %619 = vmatpush1.msra.mxu0 0.0
        %620 = vmatprep.subr.mxu0 0.0
        %621 = vmatpush1.msra.mxu0 0.0
        %622 = vmatprep.subr.mxu0 0.0
        %623 = vmatpush1.msra.mxu0 0.0
        %624 = vmatprep.subr.mxu0 0.0
        %625 = vmatpush1.msra.mxu0 0.0
        %626 = vmatprep.subr.mxu0 0.0
        %627 = vmatpush1.msra.mxu0 0.0
        %628 = vmatprep.subr.mxu0 0.0
        %629 = vmatpush1.msra.mxu0 0.0
        %630 = vmatprep.subr.mxu0 0.0
        %631 = vmatpush1.msra.mxu0 0.0
        %632 = vmatprep.subr.mxu0 0.0
        %633 = vmatpush1.msra.mxu0 0.0
        %634 = vmatprep.subr.mxu0 0.0
        %635 = vmatpush1.msra.mxu0 0.0
        %636 = vmatprep.subr.mxu0 0.0
        %637 = vmatpush1.msra.mxu0 0.0
        %638 = vmatprep.subr.mxu0 0.0
        %639 = vmatpush1.msra.mxu0 0.0
        %640 = vmatprep.subr.mxu0 0.0
        %641 = vmatpush1.msra.mxu0 0.0
        %642 = vmatprep.subr.mxu0 0.0
        %643 = vmatpush1.msra.mxu0 0.0
        %644 = vmatprep.subr.mxu0 0.0
        %645 = vmatpush1.msra.mxu0 0.0
        %646 = vmatprep.subr.mxu0 0.0
        %647 = vmatpush1.msra.mxu0 0.0
        %648 = vmatprep.subr.mxu0 0.0
        %649 = vmatpush1.msra.mxu0 0.0
        %650 = vmatprep.subr.mxu0 0.0
        %651 = vmatpush1.msra.mxu0 0.0
        %652 = vmatprep.subr.mxu0 0.0
        %653 = vmatpush1.msra.mxu0 0.0
        %654 = vmatprep.subr.mxu0 0.0
        %655 = vmatpush1.msra.mxu0 0.0
        %656 = vmatprep.subr.mxu0 0.0
        %657 = vmatpush1.msra.mxu0 0.0
        %658 = vmatprep.subr.mxu0 0.0
        %659 = vmatpush1.msra.mxu0 0.0
        %660 = vmatprep.mubr.f32.mxu0 0.0
        %661 = vmatmul.mubr.f32.gmra.mrb[0].mxu0 %v516
        %v662 = vpop.f32.mrb[0].mxu0
        %v663 = vadd.f32 0.0, %v662
        %v664 = vpop.f32.mrb[0].mxu0
        %665 = vdwg.mxu0
        %v667 = vsel %vm514, %v499, 0
        %v669 = vsel %vm518, %v497, 0
        %v671 = vsel %vm518, %v504, 0
        %v673 = vsel %vm518, %v498, 0
        %675 = vmatprep.subr.mxu0 %v671
        %676 = vmatpush1.msra.mxu0 %v669
        %677 = vmatprep.subr.mxu0 0.0
        %678 = vmatpush1.msra.mxu0 0.0
        %679 = vmatprep.subr.mxu0 0.0
        %680 = vmatpush1.msra.mxu0 0.0
        %681 = vmatprep.subr.mxu0 0.0
        %682 = vmatpush1.msra.mxu0 0.0
        %683 = vmatprep.subr.mxu0 0.0
        %684 = vmatpush1.msra.mxu0 0.0
        %685 = vmatprep.subr.mxu0 0.0
        %686 = vmatpush1.msra.mxu0 0.0
        %687 = vmatprep.subr.mxu0 0.0
        %688 = vmatpush1.msra.mxu0 0.0
        %689 = vmatprep.subr.mxu0 0.0
        %690 = vmatpush1.msra.mxu0 0.0
        %691 = vmatprep.subr.mxu0 0.0
        %692 = vmatpush1.msra.mxu0 0.0
        %693 = vmatprep.subr.mxu0 0.0
        %694 = vmatpush1.msra.mxu0 0.0
        %695 = vmatprep.subr.mxu0 0.0
        %696 = vmatpush1.msra.mxu0 0.0
        %697 = vmatprep.subr.mxu0 0.0
        %698 = vmatpush1.msra.mxu0 0.0
        %699 = vmatprep.subr.mxu0 0.0
        %700 = vmatpush1.msra.mxu0 0.0
        %701 = vmatprep.subr.mxu0 0.0
        %702 = vmatpush1.msra.mxu0 0.0
        %703 = vmatprep.subr.mxu0 0.0
        %704 = vmatpush1.msra.mxu0 0.0
        %705 = vmatprep.subr.mxu0 0.0
        %706 = vmatpush1.msra.mxu0 0.0
        %707 = vmatprep.subr.mxu0 0.0
        %708 = vmatpush1.msra.mxu0 0.0
        %709 = vmatprep.subr.mxu0 0.0
        %710 = vmatpush1.msra.mxu0 0.0
        %711 = vmatprep.subr.mxu0 0.0
        %712 = vmatpush1.msra.mxu0 0.0
        %713 = vmatprep.subr.mxu0 0.0
        %714 = vmatpush1.msra.mxu0 0.0
        %715 = vmatprep.subr.mxu0 0.0
        %716 = vmatpush1.msra.mxu0 0.0
        %717 = vmatprep.subr.mxu0 0.0
        %718 = vmatpush1.msra.mxu0 0.0
        %719 = vmatprep.subr.mxu0 0.0
        %720 = vmatpush1.msra.mxu0 0.0
        %721 = vmatprep.subr.mxu0 0.0
        %722 = vmatpush1.msra.mxu0 0.0
        %723 = vmatprep.subr.mxu0 0.0
        %724 = vmatpush1.msra.mxu0 0.0
        %725 = vmatprep.subr.mxu0 0.0
        %726 = vmatpush1.msra.mxu0 0.0
        %727 = vmatprep.subr.mxu0 0.0
        %728 = vmatpush1.msra.mxu0 0.0
        %729 = vmatprep.subr.mxu0 0.0
        %730 = vmatpush1.msra.mxu0 0.0
        %731 = vmatprep.subr.mxu0 0.0
        %732 = vmatpush1.msra.mxu0 0.0
        %733 = vmatprep.subr.mxu0 0.0
        %734 = vmatpush1.msra.mxu0 0.0
        %735 = vmatprep.subr.mxu0 0.0
        %736 = vmatpush1.msra.mxu0 0.0
        %737 = vmatprep.subr.mxu0 0.0
        %738 = vmatpush1.msra.mxu0 0.0
        %739 = vmatprep.mubr.f32.mxu0 0.0
        %740 = vmatmul.mubr.f32.gmra.mrb[0].mxu0 %v667
        %v741 = vpop.f32.mrb[0].mxu0
        %v742 = vadd.f32 %v592, %v741
        %v743 = vpop.f32.mrb[0].mxu0
        %v744 = vadd.f32 %v594, %v743
        %745 = vdwg.mxu0
        %746 = vmatprep.subr.mxu0 0.0
        %747 = vmatpush1.msra.mxu0 %v673
        %748 = vmatprep.subr.mxu0 0.0
        %749 = vmatpush1.msra.mxu0 0.0
        %750 = vmatprep.subr.mxu0 0.0
        %751 = vmatpush1.msra.mxu0 0.0
        %752 = vmatprep.subr.mxu0 0.0
        %753 = vmatpush1.msra.mxu0 0.0
        %754 = vmatprep.subr.mxu0 0.0
        %755 = vmatpush1.msra.mxu0 0.0
        %756 = vmatprep.subr.mxu0 0.0
        %757 = vmatpush1.msra.mxu0 0.0
        %758 = vmatprep.subr.mxu0 0.0
        %759 = vmatpush1.msra.mxu0 0.0
        %760 = vmatprep.subr.mxu0 0.0
        %761 = vmatpush1.msra.mxu0 0.0
        %762 = vmatprep.subr.mxu0 0.0
        %763 = vmatpush1.msra.mxu0 0.0
        %764 = vmatprep.subr.mxu0 0.0
        %765 = vmatpush1.msra.mxu0 0.0
        %766 = vmatprep.subr.mxu0 0.0
        %767 = vmatpush1.msra.mxu0 0.0
        %768 = vmatprep.subr.mxu0 0.0
        %769 = vmatpush1.msra.mxu0 0.0
        %770 = vmatprep.subr.mxu0 0.0
        %771 = vmatpush1.msra.mxu0 0.0
        %772 = vmatprep.subr.mxu0 0.0
        %773 = vmatpush1.msra.mxu0 0.0
        %774 = vmatprep.subr.mxu0 0.0
        %775 = vmatpush1.msra.mxu0 0.0
        %776 = vmatprep.subr.mxu0 0.0
        %777 = vmatpush1.msra.mxu0 0.0
        %778 = vmatprep.subr.mxu0 0.0
        %779 = vmatpush1.msra.mxu0 0.0
        %780 = vmatprep.subr.mxu0 0.0
        %781 = vmatpush1.msra.mxu0 0.0
        %782 = vmatprep.subr.mxu0 0.0
        %783 = vmatpush1.msra.mxu0 0.0
        %784 = vmatprep.subr.mxu0 0.0
        %785 = vmatpush1.msra.mxu0 0.0
        %786 = vmatprep.subr.mxu0 0.0
        %787 = vmatpush1.msra.mxu0 0.0
        %788 = vmatprep.subr.mxu0 0.0
        %789 = vmatpush1.msra.mxu0 0.0
        %790 = vmatprep.subr.mxu0 0.0
        %791 = vmatpush1.msra.mxu0 0.0
        %792 = vmatprep.subr.mxu0 0.0
        %793 = vmatpush1.msra.mxu0 0.0
        %794 = vmatprep.subr.mxu0 0.0
        %795 = vmatpush1.msra.mxu0 0.0
        %796 = vmatprep.subr.mxu0 0.0
        %797 = vmatpush1.msra.mxu0 0.0
        %798 = vmatprep.subr.mxu0 0.0
        %799 = vmatpush1.msra.mxu0 0.0
        %800 = vmatprep.subr.mxu0 0.0
        %801 = vmatpush1.msra.mxu0 0.0
        %802 = vmatprep.subr.mxu0 0.0
        %803 = vmatpush1.msra.mxu0 0.0
        %804 = vmatprep.subr.mxu0 0.0
        %805 = vmatpush1.msra.mxu0 0.0
        %806 = vmatprep.subr.mxu0 0.0
        %807 = vmatpush1.msra.mxu0 0.0
        %808 = vmatprep.subr.mxu0 0.0
        %809 = vmatpush1.msra.mxu0 0.0
        %810 = vmatprep.mubr.f32.mxu0 0.0
        %811 = vmatmul.mubr.f32.gmra.mrb[0].mxu0 %v667
        %v812 = vpop.f32.mrb[0].mxu0
        %v813 = vadd.f32 %v663, %v812
        %v814 = vpop.f32.mrb[0].mxu0
        %815 = vdwg.mxu0
        %s816 = scalar_lea.vmem %s1, 16
        %v817 = vld [vmem:[%s816] sm:$0xff]
        %818 = vrot.lane.b32.xlu0 %v497, 126
        %v819 = vpop.permute.xlu0 %818
        %820 = vrot.lane.b32.xlu0 %v504, 126
        %v821 = vpop.permute.xlu0 %820
        %822 = vrot.lane.b32.xlu0 %v498, 126
        %v823 = vpop.permute.xlu0 %822
        %vm824 = vcmask 1031168
        %v825 = vsel %vm824, %v819, %v821
        %v826 = vsel %vm824, %v821, %v823
        %v828 = vsel %vm514, %v817, 0
        %v830 = vsel %vm518, %v825, 0
        %v832 = vsel %vm518, %v826, 0
        %v834 = vsel %vm518, %v823, 0
        %836 = vmatprep.subr.mxu0 %v832
        %837 = vmatpush1.msra.mxu0 %v830
        %838 = vmatprep.subr.mxu0 0.0
        %839 = vmatpush1.msra.mxu0 0.0
        %840 = vmatprep.subr.mxu0 0.0
        %841 = vmatpush1.msra.mxu0 0.0
        %842 = vmatprep.subr.mxu0 0.0
        %843 = vmatpush1.msra.mxu0 0.0
        %844 = vmatprep.subr.mxu0 0.0
        %845 = vmatpush1.msra.mxu0 0.0
        %846 = vmatprep.subr.mxu0 0.0
        %847 = vmatpush1.msra.mxu0 0.0
        %848 = vmatprep.subr.mxu0 0.0
        %849 = vmatpush1.msra.mxu0 0.0
        %850 = vmatprep.subr.mxu0 0.0
        %851 = vmatpush1.msra.mxu0 0.0
        %852 = vmatprep.subr.mxu0 0.0
        %853 = vmatpush1.msra.mxu0 0.0
        %854 = vmatprep.subr.mxu0 0.0
        %855 = vmatpush1.msra.mxu0 0.0
        %856 = vmatprep.subr.mxu0 0.0
        %857 = vmatpush1.msra.mxu0 0.0
        %858 = vmatprep.subr.mxu0 0.0
        %859 = vmatpush1.msra.mxu0 0.0
        %860 = vmatprep.subr.mxu0 0.0
        %861 = vmatpush1.msra.mxu0 0.0
        %862 = vmatprep.subr.mxu0 0.0
        %863 = vmatpush1.msra.mxu0 0.0
        %864 = vmatprep.subr.mxu0 0.0
        %865 = vmatpush1.msra.mxu0 0.0
        %866 = vmatprep.subr.mxu0 0.0
        %867 = vmatpush1.msra.mxu0 0.0
        %868 = vmatprep.subr.mxu0 0.0
        %869 = vmatpush1.msra.mxu0 0.0
        %870 = vmatprep.subr.mxu0 0.0
        %871 = vmatpush1.msra.mxu0 0.0
        %872 = vmatprep.subr.mxu0 0.0
        %873 = vmatpush1.msra.mxu0 0.0
        %874 = vmatprep.subr.mxu0 0.0
        %875 = vmatpush1.msra.mxu0 0.0
        %876 = vmatprep.subr.mxu0 0.0
        %877 = vmatpush1.msra.mxu0 0.0
        %878 = vmatprep.subr.mxu0 0.0
        %879 = vmatpush1.msra.mxu0 0.0
        %880 = vmatprep.subr.mxu0 0.0
        %881 = vmatpush1.msra.mxu0 0.0
        %882 = vmatprep.subr.mxu0 0.0
        %883 = vmatpush1.msra.mxu0 0.0
        %884 = vmatprep.subr.mxu0 0.0
        %885 = vmatpush1.msra.mxu0 0.0
        %886 = vmatprep.subr.mxu0 0.0
        %887 = vmatpush1.msra.mxu0 0.0
        %888 = vmatprep.subr.mxu0 0.0
        %889 = vmatpush1.msra.mxu0 0.0
        %890 = vmatprep.subr.mxu0 0.0
        %891 = vmatpush1.msra.mxu0 0.0
        %892 = vmatprep.subr.mxu0 0.0
        %893 = vmatpush1.msra.mxu0 0.0
        %894 = vmatprep.subr.mxu0 0.0
        %895 = vmatpush1.msra.mxu0 0.0
        %896 = vmatprep.subr.mxu0 0.0
        %897 = vmatpush1.msra.mxu0 0.0
        %898 = vmatprep.subr.mxu0 0.0
        %899 = vmatpush1.msra.mxu0 0.0
        %900 = vmatprep.mubr.f32.mxu0 0.0
        %901 = vmatmul.mubr.f32.gmra.mrb[0].mxu0 %v828
        %v902 = vpop.f32.mrb[0].mxu0
        %v903 = vadd.f32 0.0, %v902
        %v904 = vpop.f32.mrb[0].mxu0
        %v905 = vadd.f32 0.0, %v904
        %906 = vdwg.mxu0
        %907 = vmatprep.subr.mxu0 0.0
        %908 = vmatpush1.msra.mxu0 %v834
        %909 = vmatprep.subr.mxu0 0.0
        %910 = vmatpush1.msra.mxu0 0.0
        %911 = vmatprep.subr.mxu0 0.0
        %912 = vmatpush1.msra.mxu0 0.0
        %913 = vmatprep.subr.mxu0 0.0
        %914 = vmatpush1.msra.mxu0 0.0
        %915 = vmatprep.subr.mxu0 0.0
        %916 = vmatpush1.msra.mxu0 0.0
        %917 = vmatprep.subr.mxu0 0.0
        %918 = vmatpush1.msra.mxu0 0.0
        %919 = vmatprep.subr.mxu0 0.0
        %920 = vmatpush1.msra.mxu0 0.0
        %921 = vmatprep.subr.mxu0 0.0
        %922 = vmatpush1.msra.mxu0 0.0
        %923 = vmatprep.subr.mxu0 0.0
        %924 = vmatpush1.msra.mxu0 0.0
        %925 = vmatprep.subr.mxu0 0.0
        %926 = vmatpush1.msra.mxu0 0.0
        %927 = vmatprep.subr.mxu0 0.0
        %928 = vmatpush1.msra.mxu0 0.0
        %929 = vmatprep.subr.mxu0 0.0
        %930 = vmatpush1.msra.mxu0 0.0
        %931 = vmatprep.subr.mxu0 0.0
        %932 = vmatpush1.msra.mxu0 0.0
        %933 = vmatprep.subr.mxu0 0.0
        %934 = vmatpush1.msra.mxu0 0.0
        %935 = vmatprep.subr.mxu0 0.0
        %936 = vmatpush1.msra.mxu0 0.0
        %937 = vmatprep.subr.mxu0 0.0
        %938 = vmatpush1.msra.mxu0 0.0
        %939 = vmatprep.subr.mxu0 0.0
        %940 = vmatpush1.msra.mxu0 0.0
        %941 = vmatprep.subr.mxu0 0.0
        %942 = vmatpush1.msra.mxu0 0.0
        %943 = vmatprep.subr.mxu0 0.0
        %944 = vmatpush1.msra.mxu0 0.0
        %945 = vmatprep.subr.mxu0 0.0
        %946 = vmatpush1.msra.mxu0 0.0
        %947 = vmatprep.subr.mxu0 0.0
        %948 = vmatpush1.msra.mxu0 0.0
        %949 = vmatprep.subr.mxu0 0.0
        %950 = vmatpush1.msra.mxu0 0.0
        %951 = vmatprep.subr.mxu0 0.0
        %952 = vmatpush1.msra.mxu0 0.0
        %953 = vmatprep.subr.mxu0 0.0
        %954 = vmatpush1.msra.mxu0 0.0
        %955 = vmatprep.subr.mxu0 0.0
        %956 = vmatpush1.msra.mxu0 0.0
        %957 = vmatprep.subr.mxu0 0.0
        %958 = vmatpush1.msra.mxu0 0.0
        %959 = vmatprep.subr.mxu0 0.0
        %960 = vmatpush1.msra.mxu0 0.0
        %961 = vmatprep.subr.mxu0 0.0
        %962 = vmatpush1.msra.mxu0 0.0
        %963 = vmatprep.subr.mxu0 0.0
        %964 = vmatpush1.msra.mxu0 0.0
        %965 = vmatprep.subr.mxu0 0.0
        %966 = vmatpush1.msra.mxu0 0.0
        %967 = vmatprep.subr.mxu0 0.0
        %968 = vmatpush1.msra.mxu0 0.0
        %969 = vmatprep.subr.mxu0 0.0
        %970 = vmatpush1.msra.mxu0 0.0
        %971 = vmatprep.mubr.f32.mxu0 0.0
        %972 = vmatmul.mubr.f32.gmra.mrb[0].mxu0 %v828
        %v973 = vpop.f32.mrb[0].mxu0
        %v974 = vadd.f32 0.0, %v973
        %v975 = vpop.f32.mrb[0].mxu0
        %976 = vdwg.mxu0
        %v977 = vadd.f32 %v742, %v903
        %v978 = vadd.f32 %v744, %v905
        %v979 = vadd.f32 %v813, %v974
        %s980 = scalar_lea.vmem %s1, 24
        %v981 = vld [vmem:[%s980] sm:$0xff]
        %982 = vrot.lane.b32.xlu0 %v497, 110
        %v983 = vpop.permute.xlu0 %982
        %984 = vrot.lane.b32.xlu0 %v504, 110
        %v985 = vpop.permute.xlu0 %984
        %986 = vrot.lane.b32.xlu0 %v498, 110
        %v987 = vpop.permute.xlu0 %986
        %vm988 = vcmask 900096
        %v989 = vsel %vm988, %v983, %v985
        %v990 = vsel %vm988, %v985, %v987
        %v992 = vsel %vm514, %v981, 0
        %v994 = vsel %vm518, %v989, 0
        %v996 = vsel %vm518, %v990, 0
        %v998 = vsel %vm518, %v987, 0
        %1000 = vmatprep.subr.mxu0 %v996
        %1001 = vmatpush1.msra.mxu0 %v994
        %1002 = vmatprep.subr.mxu0 0.0
        %1003 = vmatpush1.msra.mxu0 0.0
        %1004 = vmatprep.subr.mxu0 0.0
        %1005 = vmatpush1.msra.mxu0 0.0
        %1006 = vmatprep.subr.mxu0 0.0
        %1007 = vmatpush1.msra.mxu0 0.0
        %1008 = vmatprep.subr.mxu0 0.0
        %1009 = vmatpush1.msra.mxu0 0.0
        %1010 = vmatprep.subr.mxu0 0.0
        %1011 = vmatpush1.msra.mxu0 0.0
        %1012 = vmatprep.subr.mxu0 0.0
        %1013 = vmatpush1.msra.mxu0 0.0
        %1014 = vmatprep.subr.mxu0 0.0
        %1015 = vmatpush1.msra.mxu0 0.0
        %1016 = vmatprep.subr.mxu0 0.0
        %1017 = vmatpush1.msra.mxu0 0.0
        %1018 = vmatprep.subr.mxu0 0.0
        %1019 = vmatpush1.msra.mxu0 0.0
        %1020 = vmatprep.subr.mxu0 0.0
        %1021 = vmatpush1.msra.mxu0 0.0
        %1022 = vmatprep.subr.mxu0 0.0
        %1023 = vmatpush1.msra.mxu0 0.0
        %1024 = vmatprep.subr.mxu0 0.0
        %1025 = vmatpush1.msra.mxu0 0.0
        %1026 = vmatprep.subr.mxu0 0.0
        %1027 = vmatpush1.msra.mxu0 0.0
        %1028 = vmatprep.subr.mxu0 0.0
        %1029 = vmatpush1.msra.mxu0 0.0
        %1030 = vmatprep.subr.mxu0 0.0
        %1031 = vmatpush1.msra.mxu0 0.0
        %1032 = vmatprep.subr.mxu0 0.0
        %1033 = vmatpush1.msra.mxu0 0.0
        %1034 = vmatprep.subr.mxu0 0.0
        %1035 = vmatpush1.msra.mxu0 0.0
        %1036 = vmatprep.subr.mxu0 0.0
        %1037 = vmatpush1.msra.mxu0 0.0
        %1038 = vmatprep.subr.mxu0 0.0
        %1039 = vmatpush1.msra.mxu0 0.0
        %1040 = vmatprep.subr.mxu0 0.0
        %1041 = vmatpush1.msra.mxu0 0.0
        %1042 = vmatprep.subr.mxu0 0.0
        %1043 = vmatpush1.msra.mxu0 0.0
        %1044 = vmatprep.subr.mxu0 0.0
        %1045 = vmatpush1.msra.mxu0 0.0
        %1046 = vmatprep.subr.mxu0 0.0
        %1047 = vmatpush1.msra.mxu0 0.0
        %1048 = vmatprep.subr.mxu0 0.0
        %1049 = vmatpush1.msra.mxu0 0.0
        %1050 = vmatprep.subr.mxu0 0.0
        %1051 = vmatpush1.msra.mxu0 0.0
        %1052 = vmatprep.subr.mxu0 0.0
        %1053 = vmatpush1.msra.mxu0 0.0
        %1054 = vmatprep.subr.mxu0 0.0
        %1055 = vmatpush1.msra.mxu0 0.0
        %1056 = vmatprep.subr.mxu0 0.0
        %1057 = vmatpush1.msra.mxu0 0.0
        %1058 = vmatprep.subr.mxu0 0.0
        %1059 = vmatpush1.msra.mxu0 0.0
        %1060 = vmatprep.subr.mxu0 0.0
        %1061 = vmatpush1.msra.mxu0 0.0
        %1062 = vmatprep.subr.mxu0 0.0
        %1063 = vmatpush1.msra.mxu0 0.0
        %1064 = vmatprep.mubr.f32.mxu0 0.0
        %1065 = vmatmul.mubr.f32.gmra.mrb[0].mxu0 %v992
        %v1066 = vpop.f32.mrb[0].mxu0
        %v1067 = vadd.f32 0.0, %v1066
        %v1068 = vpop.f32.mrb[0].mxu0
        %v1069 = vadd.f32 0.0, %v1068
        %1070 = vdwg.mxu0
        %1071 = vmatprep.subr.mxu0 0.0
        %1072 = vmatpush1.msra.mxu0 %v998
        %1073 = vmatprep.subr.mxu0 0.0
        %1074 = vmatpush1.msra.mxu0 0.0
        %1075 = vmatprep.subr.mxu0 0.0
        %1076 = vmatpush1.msra.mxu0 0.0
        %1077 = vmatprep.subr.mxu0 0.0
        %1078 = vmatpush1.msra.mxu0 0.0
        %1079 = vmatprep.subr.mxu0 0.0
        %1080 = vmatpush1.msra.mxu0 0.0
        %1081 = vmatprep.subr.mxu0 0.0
        %1082 = vmatpush1.msra.mxu0 0.0
        %1083 = vmatprep.subr.mxu0 0.0
        %1084 = vmatpush1.msra.mxu0 0.0
        %1085 = vmatprep.subr.mxu0 0.0
        %1086 = vmatpush1.msra.mxu0 0.0
        %1087 = vmatprep.subr.mxu0 0.0
        %1088 = vmatpush1.msra.mxu0 0.0
        %1089 = vmatprep.subr.mxu0 0.0
        %1090 = vmatpush1.msra.mxu0 0.0
        %1091 = vmatprep.subr.mxu0 0.0
        %1092 = vmatpush1.msra.mxu0 0.0
        %1093 = vmatprep.subr.mxu0 0.0
        %1094 = vmatpush1.msra.mxu0 0.0
        %1095 = vmatprep.subr.mxu0 0.0
        %1096 = vmatpush1.msra.mxu0 0.0
        %1097 = vmatprep.subr.mxu0 0.0
        %1098 = vmatpush1.msra.mxu0 0.0
        %1099 = vmatprep.subr.mxu0 0.0
        %1100 = vmatpush1.msra.mxu0 0.0
        %1101 = vmatprep.subr.mxu0 0.0
        %1102 = vmatpush1.msra.mxu0 0.0
        %1103 = vmatprep.subr.mxu0 0.0
        %1104 = vmatpush1.msra.mxu0 0.0
        %1105 = vmatprep.subr.mxu0 0.0
        %1106 = vmatpush1.msra.mxu0 0.0
        %1107 = vmatprep.subr.mxu0 0.0
        %1108 = vmatpush1.msra.mxu0 0.0
        %1109 = vmatprep.subr.mxu0 0.0
        %1110 = vmatpush1.msra.mxu0 0.0
        %1111 = vmatprep.subr.mxu0 0.0
        %1112 = vmatpush1.msra.mxu0 0.0
        %1113 = vmatprep.subr.mxu0 0.0
        %1114 = vmatpush1.msra.mxu0 0.0
        %1115 = vmatprep.subr.mxu0 0.0
        %1116 = vmatpush1.msra.mxu0 0.0
        %1117 = vmatprep.subr.mxu0 0.0
        %1118 = vmatpush1.msra.mxu0 0.0
        %1119 = vmatprep.subr.mxu0 0.0
        %1120 = vmatpush1.msra.mxu0 0.0
        %1121 = vmatprep.subr.mxu0 0.0
        %1122 = vmatpush1.msra.mxu0 0.0
        %1123 = vmatprep.subr.mxu0 0.0
        %1124 = vmatpush1.msra.mxu0 0.0
        %1125 = vmatprep.subr.mxu0 0.0
        %1126 = vmatpush1.msra.mxu0 0.0
        %1127 = vmatprep.subr.mxu0 0.0
        %1128 = vmatpush1.msra.mxu0 0.0
        %1129 = vmatprep.subr.mxu0 0.0
        %1130 = vmatpush1.msra.mxu0 0.0
        %1131 = vmatprep.subr.mxu0 0.0
        %1132 = vmatpush1.msra.mxu0 0.0
        %1133 = vmatprep.subr.mxu0 0.0
        %1134 = vmatpush1.msra.mxu0 0.0
        %1135 = vmatprep.mubr.f32.mxu0 0.0
        %1136 = vmatmul.mubr.f32.gmra.mrb[0].mxu0 %v992
        %v1137 = vpop.f32.mrb[0].mxu0
        %v1138 = vadd.f32 0.0, %v1137
        %v1139 = vpop.f32.mrb[0].mxu0
        %1140 = vdwg.mxu0
        %v1141 = vadd.f32 %v977, %v1067
        %v1142 = vadd.f32 %v978, %v1069
        %v1143 = vadd.f32 %v979, %v1138
        %s1144 = scalar_lea.vmem %s1, 32
        %v1145 = vld [vmem:[%s1144] sm:$0xff]
        %1146 = vrot.lane.b32.xlu0 %v497, 109
        %v1147 = vpop.permute.xlu0 %1146
        %1148 = vrot.lane.b32.xlu0 %v504, 109
        %v1149 = vpop.permute.xlu0 %1148
        %1150 = vrot.lane.b32.xlu0 %v498, 109
        %v1151 = vpop.permute.xlu0 %1150
        %vm1152 = vcmask 891904
        %v1153 = vsel %vm1152, %v1147, %v1149
        %v1154 = vsel %vm1152, %v1149, %v1151
        %v1156 = vsel %vm514, %v1145, 0
        %v1158 = vsel %vm518, %v1153, 0
        %v1160 = vsel %vm518, %v1154, 0
        %v1162 = vsel %vm518, %v1151, 0
        %1164 = vmatprep.subr.mxu0 %v1160
        %1165 = vmatpush1.msra.mxu0 %v1158
        %1166 = vmatprep.subr.mxu0 0.0
        %1167 = vmatpush1.msra.mxu0 0.0
        %1168 = vmatprep.subr.mxu0 0.0
        %1169 = vmatpush1.msra.mxu0 0.0
        %1170 = vmatprep.subr.mxu0 0.0
        %1171 = vmatpush1.msra.mxu0 0.0
        %1172 = vmatprep.subr.mxu0 0.0
        %1173 = vmatpush1.msra.mxu0 0.0
        %1174 = vmatprep.subr.mxu0 0.0
        %1175 = vmatpush1.msra.mxu0 0.0
        %1176 = vmatprep.subr.mxu0 0.0
        %1177 = vmatpush1.msra.mxu0 0.0
        %1178 = vmatprep.subr.mxu0 0.0
        %1179 = vmatpush1.msra.mxu0 0.0
        %1180 = vmatprep.subr.mxu0 0.0
        %1181 = vmatpush1.msra.mxu0 0.0
        %1182 = vmatprep.subr.mxu0 0.0
        %1183 = vmatpush1.msra.mxu0 0.0
        %1184 = vmatprep.subr.mxu0 0.0
        %1185 = vmatpush1.msra.mxu0 0.0
        %1186 = vmatprep.subr.mxu0 0.0
        %1187 = vmatpush1.msra.mxu0 0.0
        %1188 = vmatprep.subr.mxu0 0.0
        %1189 = vmatpush1.msra.mxu0 0.0
        %1190 = vmatprep.subr.mxu0 0.0
        %1191 = vmatpush1.msra.mxu0 0.0
        %1192 = vmatprep.subr.mxu0 0.0
        %1193 = vmatpush1.msra.mxu0 0.0
        %1194 = vmatprep.subr.mxu0 0.0
        %1195 = vmatpush1.msra.mxu0 0.0
        %1196 = vmatprep.subr.mxu0 0.0
        %1197 = vmatpush1.msra.mxu0 0.0
        %1198 = vmatprep.subr.mxu0 0.0
        %1199 = vmatpush1.msra.mxu0 0.0
        %1200 = vmatprep.subr.mxu0 0.0
        %1201 = vmatpush1.msra.mxu0 0.0
        %1202 = vmatprep.subr.mxu0 0.0
        %1203 = vmatpush1.msra.mxu0 0.0
        %1204 = vmatprep.subr.mxu0 0.0
        %1205 = vmatpush1.msra.mxu0 0.0
        %1206 = vmatprep.subr.mxu0 0.0
        %1207 = vmatpush1.msra.mxu0 0.0
        %1208 = vmatprep.subr.mxu0 0.0
        %1209 = vmatpush1.msra.mxu0 0.0
        %1210 = vmatprep.subr.mxu0 0.0
        %1211 = vmatpush1.msra.mxu0 0.0
        %1212 = vmatprep.subr.mxu0 0.0
        %1213 = vmatpush1.msra.mxu0 0.0
        %1214 = vmatprep.subr.mxu0 0.0
        %1215 = vmatpush1.msra.mxu0 0.0
        %1216 = vmatprep.subr.mxu0 0.0
        %1217 = vmatpush1.msra.mxu0 0.0
        %1218 = vmatprep.subr.mxu0 0.0
        %1219 = vmatpush1.msra.mxu0 0.0
        %1220 = vmatprep.subr.mxu0 0.0
        %1221 = vmatpush1.msra.mxu0 0.0
        %1222 = vmatprep.subr.mxu0 0.0
        %1223 = vmatpush1.msra.mxu0 0.0
        %1224 = vmatprep.subr.mxu0 0.0
        %1225 = vmatpush1.msra.mxu0 0.0
        %1226 = vmatprep.subr.mxu0 0.0
        %1227 = vmatpush1.msra.mxu0 0.0
        %1228 = vmatprep.mubr.f32.mxu0 0.0
        %1229 = vmatmul.mubr.f32.gmra.mrb[0].mxu0 %v1156
        %v1230 = vpop.f32.mrb[0].mxu0
        %v1231 = vadd.f32 0.0, %v1230
        %v1232 = vpop.f32.mrb[0].mxu0
        %v1233 = vadd.f32 0.0, %v1232
        %1234 = vdwg.mxu0
        %1235 = vmatprep.subr.mxu0 0.0
        %1236 = vmatpush1.msra.mxu0 %v1162
        %1237 = vmatprep.subr.mxu0 0.0
        %1238 = vmatpush1.msra.mxu0 0.0
        %1239 = vmatprep.subr.mxu0 0.0
        %1240 = vmatpush1.msra.mxu0 0.0
        %1241 = vmatprep.subr.mxu0 0.0
        %1242 = vmatpush1.msra.mxu0 0.0
        %1243 = vmatprep.subr.mxu0 0.0
        %1244 = vmatpush1.msra.mxu0 0.0
        %1245 = vmatprep.subr.mxu0 0.0
        %1246 = vmatpush1.msra.mxu0 0.0
        %1247 = vmatprep.subr.mxu0 0.0
        %1248 = vmatpush1.msra.mxu0 0.0
        %1249 = vmatprep.subr.mxu0 0.0
        %1250 = vmatpush1.msra.mxu0 0.0
        %1251 = vmatprep.subr.mxu0 0.0
        %1252 = vmatpush1.msra.mxu0 0.0
        %1253 = vmatprep.subr.mxu0 0.0
        %1254 = vmatpush1.msra.mxu0 0.0
        %1255 = vmatprep.subr.mxu0 0.0
        %1256 = vmatpush1.msra.mxu0 0.0
        %1257 = vmatprep.subr.mxu0 0.0
        %1258 = vmatpush1.msra.mxu0 0.0
        %1259 = vmatprep.subr.mxu0 0.0
        %1260 = vmatpush1.msra.mxu0 0.0
        %1261 = vmatprep.subr.mxu0 0.0
        %1262 = vmatpush1.msra.mxu0 0.0
        %1263 = vmatprep.subr.mxu0 0.0
        %1264 = vmatpush1.msra.mxu0 0.0
        %1265 = vmatprep.subr.mxu0 0.0
        %1266 = vmatpush1.msra.mxu0 0.0
        %1267 = vmatprep.subr.mxu0 0.0
        %1268 = vmatpush1.msra.mxu0 0.0
        %1269 = vmatprep.subr.mxu0 0.0
        %1270 = vmatpush1.msra.mxu0 0.0
        %1271 = vmatprep.subr.mxu0 0.0
        %1272 = vmatpush1.msra.mxu0 0.0
        %1273 = vmatprep.subr.mxu0 0.0
        %1274 = vmatpush1.msra.mxu0 0.0
        %1275 = vmatprep.subr.mxu0 0.0
        %1276 = vmatpush1.msra.mxu0 0.0
        %1277 = vmatprep.subr.mxu0 0.0
        %1278 = vmatpush1.msra.mxu0 0.0
        %1279 = vmatprep.subr.mxu0 0.0
        %1280 = vmatpush1.msra.mxu0 0.0
        %1281 = vmatprep.subr.mxu0 0.0
        %1282 = vmatpush1.msra.mxu0 0.0
        %1283 = vmatprep.subr.mxu0 0.0
        %1284 = vmatpush1.msra.mxu0 0.0
        %1285 = vmatprep.subr.mxu0 0.0
        %1286 = vmatpush1.msra.mxu0 0.0
        %1287 = vmatprep.subr.mxu0 0.0
        %1288 = vmatpush1.msra.mxu0 0.0
        %1289 = vmatprep.subr.mxu0 0.0
        %1290 = vmatpush1.msra.mxu0 0.0
        %1291 = vmatprep.subr.mxu0 0.0
        %1292 = vmatpush1.msra.mxu0 0.0
        %1293 = vmatprep.subr.mxu0 0.0
        %1294 = vmatpush1.msra.mxu0 0.0
        %1295 = vmatprep.subr.mxu0 0.0
        %1296 = vmatpush1.msra.mxu0 0.0
        %1297 = vmatprep.subr.mxu0 0.0
        %1298 = vmatpush1.msra.mxu0 0.0
        %1299 = vmatprep.mubr.f32.mxu0 0.0
        %1300 = vmatmul.mubr.f32.gmra.mrb[0].mxu0 %v1156
        %v1301 = vpop.f32.mrb[0].mxu0
        %v1302 = vadd.f32 0.0, %v1301
        %v1303 = vpop.f32.mrb[0].mxu0
        %1304 = vdwg.mxu0
        %v1305 = vadd.f32 %v1141, %v1231
        %v1306 = vadd.f32 %v1142, %v1233
        %v1307 = vadd.f32 %v1143, %v1302
        %s1308 = scalar_lea.vmem %s1, 40
        %v1309 = vld [vmem:[%s1308] sm:$0xff]
        %1310 = vrot.lane.b32.xlu0 %v497, 108
        %v1311 = vpop.permute.xlu0 %1310
        %1312 = vrot.lane.b32.xlu0 %v504, 108
        %v1313 = vpop.permute.xlu0 %1312
        %1314 = vrot.lane.b32.xlu0 %v498, 108
        %v1315 = vpop.permute.xlu0 %1314
        %vm1316 = vcmask 883712
        %v1317 = vsel %vm1316, %v1311, %v1313
        %v1318 = vsel %vm1316, %v1313, %v1315
        %v1320 = vsel %vm514, %v1309, 0
        %v1322 = vsel %vm518, %v1317, 0
        %v1324 = vsel %vm518, %v1318, 0
        %v1326 = vsel %vm518, %v1315, 0
        %1328 = vmatprep.subr.mxu0 %v1324
        %1329 = vmatpush1.msra.mxu0 %v1322
        %1330 = vmatprep.subr.mxu0 0.0
        %1331 = vmatpush1.msra.mxu0 0.0
        %1332 = vmatprep.subr.mxu0 0.0
        %1333 = vmatpush1.msra.mxu0 0.0
        %1334 = vmatprep.subr.mxu0 0.0
        %1335 = vmatpush1.msra.mxu0 0.0
        %1336 = vmatprep.subr.mxu0 0.0
        %1337 = vmatpush1.msra.mxu0 0.0
        %1338 = vmatprep.subr.mxu0 0.0
        %1339 = vmatpush1.msra.mxu0 0.0
        %1340 = vmatprep.subr.mxu0 0.0
        %1341 = vmatpush1.msra.mxu0 0.0
        %1342 = vmatprep.subr.mxu0 0.0
        %1343 = vmatpush1.msra.mxu0 0.0
        %1344 = vmatprep.subr.mxu0 0.0
        %1345 = vmatpush1.msra.mxu0 0.0
        %1346 = vmatprep.subr.mxu0 0.0
        %1347 = vmatpush1.msra.mxu0 0.0
        %1348 = vmatprep.subr.mxu0 0.0
        %1349 = vmatpush1.msra.mxu0 0.0
        %1350 = vmatprep.subr.mxu0 0.0
        %1351 = vmatpush1.msra.mxu0 0.0
        %1352 = vmatprep.subr.mxu0 0.0
        %1353 = vmatpush1.msra.mxu0 0.0
        %1354 = vmatprep.subr.mxu0 0.0
        %1355 = vmatpush1.msra.mxu0 0.0
        %1356 = vmatprep.subr.mxu0 0.0
        %1357 = vmatpush1.msra.mxu0 0.0
        %1358 = vmatprep.subr.mxu0 0.0
        %1359 = vmatpush1.msra.mxu0 0.0
        %1360 = vmatprep.subr.mxu0 0.0
        %1361 = vmatpush1.msra.mxu0 0.0
        %1362 = vmatprep.subr.mxu0 0.0
        %1363 = vmatpush1.msra.mxu0 0.0
        %1364 = vmatprep.subr.mxu0 0.0
        %1365 = vmatpush1.msra.mxu0 0.0
        %1366 = vmatprep.subr.mxu0 0.0
        %1367 = vmatpush1.msra.mxu0 0.0
        %1368 = vmatprep.subr.mxu0 0.0
        %1369 = vmatpush1.msra.mxu0 0.0
        %1370 = vmatprep.subr.mxu0 0.0
        %1371 = vmatpush1.msra.mxu0 0.0
        %1372 = vmatprep.subr.mxu0 0.0
        %1373 = vmatpush1.msra.mxu0 0.0
        %1374 = vmatprep.subr.mxu0 0.0
        %1375 = vmatpush1.msra.mxu0 0.0
        %1376 = vmatprep.subr.mxu0 0.0
        %1377 = vmatpush1.msra.mxu0 0.0
        %1378 = vmatprep.subr.mxu0 0.0
        %1379 = vmatpush1.msra.mxu0 0.0
        %1380 = vmatprep.subr.mxu0 0.0
        %1381 = vmatpush1.msra.mxu0 0.0
        %1382 = vmatprep.subr.mxu0 0.0
        %1383 = vmatpush1.msra.mxu0 0.0
        %1384 = vmatprep.subr.mxu0 0.0
        %1385 = vmatpush1.msra.mxu0 0.0
        %1386 = vmatprep.subr.mxu0 0.0
        %1387 = vmatpush1.msra.mxu0 0.0
        %1388 = vmatprep.subr.mxu0 0.0
        %1389 = vmatpush1.msra.mxu0 0.0
        %1390 = vmatprep.subr.mxu0 0.0
        %1391 = vmatpush1.msra.mxu0 0.0
        %1392 = vmatprep.mubr.f32.mxu0 0.0
        %1393 = vmatmul.mubr.f32.gmra.mrb[0].mxu0 %v1320
        %v1394 = vpop.f32.mrb[0].mxu0
        %v1395 = vadd.f32 0.0, %v1394
        %v1396 = vpop.f32.mrb[0].mxu0
        %v1397 = vadd.f32 0.0, %v1396
        %1398 = vdwg.mxu0
        %1399 = vmatprep.subr.mxu0 0.0
        %1400 = vmatpush1.msra.mxu0 %v1326
        %1401 = vmatprep.subr.mxu0 0.0
        %1402 = vmatpush1.msra.mxu0 0.0
        %1403 = vmatprep.subr.mxu0 0.0
        %1404 = vmatpush1.msra.mxu0 0.0
        %1405 = vmatprep.subr.mxu0 0.0
        %1406 = vmatpush1.msra.mxu0 0.0
        %1407 = vmatprep.subr.mxu0 0.0
        %1408 = vmatpush1.msra.mxu0 0.0
        %1409 = vmatprep.subr.mxu0 0.0
        %1410 = vmatpush1.msra.mxu0 0.0
        %1411 = vmatprep.subr.mxu0 0.0
        %1412 = vmatpush1.msra.mxu0 0.0
        %1413 = vmatprep.subr.mxu0 0.0
        %1414 = vmatpush1.msra.mxu0 0.0
        %1415 = vmatprep.subr.mxu0 0.0
        %1416 = vmatpush1.msra.mxu0 0.0
        %1417 = vmatprep.subr.mxu0 0.0
        %1418 = vmatpush1.msra.mxu0 0.0
        %1419 = vmatprep.subr.mxu0 0.0
        %1420 = vmatpush1.msra.mxu0 0.0
        %1421 = vmatprep.subr.mxu0 0.0
        %1422 = vmatpush1.msra.mxu0 0.0
        %1423 = vmatprep.subr.mxu0 0.0
        %1424 = vmatpush1.msra.mxu0 0.0
        %1425 = vmatprep.subr.mxu0 0.0
        %1426 = vmatpush1.msra.mxu0 0.0
        %1427 = vmatprep.subr.mxu0 0.0
        %1428 = vmatpush1.msra.mxu0 0.0
        %1429 = vmatprep.subr.mxu0 0.0
        %1430 = vmatpush1.msra.mxu0 0.0
        %1431 = vmatprep.subr.mxu0 0.0
        %1432 = vmatpush1.msra.mxu0 0.0
        %1433 = vmatprep.subr.mxu0 0.0
        %1434 = vmatpush1.msra.mxu0 0.0
        %1435 = vmatprep.subr.mxu0 0.0
        %1436 = vmatpush1.msra.mxu0 0.0
        %1437 = vmatprep.subr.mxu0 0.0
        %1438 = vmatpush1.msra.mxu0 0.0
        %1439 = vmatprep.subr.mxu0 0.0
        %1440 = vmatpush1.msra.mxu0 0.0
        %1441 = vmatprep.subr.mxu0 0.0
        %1442 = vmatpush1.msra.mxu0 0.0
        %1443 = vmatprep.subr.mxu0 0.0
        %1444 = vmatpush1.msra.mxu0 0.0
        %1445 = vmatprep.subr.mxu0 0.0
        %1446 = vmatpush1.msra.mxu0 0.0
        %1447 = vmatprep.subr.mxu0 0.0
        %1448 = vmatpush1.msra.mxu0 0.0
        %1449 = vmatprep.subr.mxu0 0.0
        %1450 = vmatpush1.msra.mxu0 0.0
        %1451 = vmatprep.subr.mxu0 0.0
        %1452 = vmatpush1.msra.mxu0 0.0
        %1453 = vmatprep.subr.mxu0 0.0
        %1454 = vmatpush1.msra.mxu0 0.0
        %1455 = vmatprep.subr.mxu0 0.0
        %1456 = vmatpush1.msra.mxu0 0.0
        %1457 = vmatprep.subr.mxu0 0.0
        %1458 = vmatpush1.msra.mxu0 0.0
        %1459 = vmatprep.subr.mxu0 0.0
        %1460 = vmatpush1.msra.mxu0 0.0
        %1461 = vmatprep.subr.mxu0 0.0
        %1462 = vmatpush1.msra.mxu0 0.0
        %1463 = vmatprep.mubr.f32.mxu0 0.0
        %1464 = vmatmul.mubr.f32.gmra.mrb[0].mxu0 %v1320
        %v1465 = vpop.f32.mrb[0].mxu0
        %v1466 = vadd.f32 0.0, %v1465
        %v1467 = vpop.f32.mrb[0].mxu0
        %1468 = vdwg.mxu0
        %v1469 = vadd.f32 %v1305, %v1395
        %v1470 = vadd.f32 %v1306, %v1397
        %v1471 = vadd.f32 %v1307, %v1466
        %s1472 = scalar_lea.vmem %s1, 48
        %v1473 = vld [vmem:[%s1472] sm:$0xff]
        %1474 = vrot.lane.b32.xlu0 %v497, 92
        %v1475 = vpop.permute.xlu0 %1474
        %1476 = vrot.lane.b32.xlu0 %v504, 92
        %v1477 = vpop.permute.xlu0 %1476
        %1478 = vrot.lane.b32.xlu0 %v498, 92
        %v1479 = vpop.permute.xlu0 %1478
        %vm1480 = vcmask 752640
        %v1481 = vsel %vm1480, %v1475, %v1477
        %v1482 = vsel %vm1480, %v1477, %v1479
        %v1484 = vsel %vm514, %v1473, 0
        %v1486 = vsel %vm518, %v1481, 0
        %v1488 = vsel %vm518, %v1482, 0
        %v1490 = vsel %vm518, %v1479, 0
        %1492 = vmatprep.subr.mxu0 %v1488
        %1493 = vmatpush1.msra.mxu0 %v1486
        %1494 = vmatprep.subr.mxu0 0.0
        %1495 = vmatpush1.msra.mxu0 0.0
        %1496 = vmatprep.subr.mxu0 0.0
        %1497 = vmatpush1.msra.mxu0 0.0
        %1498 = vmatprep.subr.mxu0 0.0
        %1499 = vmatpush1.msra.mxu0 0.0
        %1500 = vmatprep.subr.mxu0 0.0
        %1501 = vmatpush1.msra.mxu0 0.0
        %1502 = vmatprep.subr.mxu0 0.0
        %1503 = vmatpush1.msra.mxu0 0.0
        %1504 = vmatprep.subr.mxu0 0.0
        %1505 = vmatpush1.msra.mxu0 0.0
        %1506 = vmatprep.subr.mxu0 0.0
        %1507 = vmatpush1.msra.mxu0 0.0
        %1508 = vmatprep.subr.mxu0 0.0
        %1509 = vmatpush1.msra.mxu0 0.0
        %1510 = vmatprep.subr.mxu0 0.0
        %1511 = vmatpush1.msra.mxu0 0.0
        %1512 = vmatprep.subr.mxu0 0.0
        %1513 = vmatpush1.msra.mxu0 0.0
        %1514 = vmatprep.subr.mxu0 0.0
        %1515 = vmatpush1.msra.mxu0 0.0
        %1516 = vmatprep.subr.mxu0 0.0
        %1517 = vmatpush1.msra.mxu0 0.0
        %1518 = vmatprep.subr.mxu0 0.0
        %1519 = vmatpush1.msra.mxu0 0.0
        %1520 = vmatprep.subr.mxu0 0.0
        %1521 = vmatpush1.msra.mxu0 0.0
        %1522 = vmatprep.subr.mxu0 0.0
        %1523 = vmatpush1.msra.mxu0 0.0
        %1524 = vmatprep.subr.mxu0 0.0
        %1525 = vmatpush1.msra.mxu0 0.0
        %1526 = vmatprep.subr.mxu0 0.0
        %1527 = vmatpush1.msra.mxu0 0.0
        %1528 = vmatprep.subr.mxu0 0.0
        %1529 = vmatpush1.msra.mxu0 0.0
        %1530 = vmatprep.subr.mxu0 0.0
        %1531 = vmatpush1.msra.mxu0 0.0
        %1532 = vmatprep.subr.mxu0 0.0
        %1533 = vmatpush1.msra.mxu0 0.0
        %1534 = vmatprep.subr.mxu0 0.0
        %1535 = vmatpush1.msra.mxu0 0.0
        %1536 = vmatprep.subr.mxu0 0.0
        %1537 = vmatpush1.msra.mxu0 0.0
        %1538 = vmatprep.subr.mxu0 0.0
        %1539 = vmatpush1.msra.mxu0 0.0
        %1540 = vmatprep.subr.mxu0 0.0
        %1541 = vmatpush1.msra.mxu0 0.0
        %1542 = vmatprep.subr.mxu0 0.0
        %1543 = vmatpush1.msra.mxu0 0.0
        %1544 = vmatprep.subr.mxu0 0.0
        %1545 = vmatpush1.msra.mxu0 0.0
        %1546 = vmatprep.subr.mxu0 0.0
        %1547 = vmatpush1.msra.mxu0 0.0
        %1548 = vmatprep.subr.mxu0 0.0
        %1549 = vmatpush1.msra.mxu0 0.0
        %1550 = vmatprep.subr.mxu0 0.0
        %1551 = vmatpush1.msra.mxu0 0.0
        %1552 = vmatprep.subr.mxu0 0.0
        %1553 = vmatpush1.msra.mxu0 0.0
        %1554 = vmatprep.subr.mxu0 0.0
        %1555 = vmatpush1.msra.mxu0 0.0
        %1556 = vmatprep.mubr.f32.mxu0 0.0
        %1557 = vmatmul.mubr.f32.gmra.mrb[0].mxu0 %v1484
        %v1558 = vpop.f32.mrb[0].mxu0
        %v1559 = vadd.f32 0.0, %v1558
        %v1560 = vpop.f32.mrb[0].mxu0
        %v1561 = vadd.f32 0.0, %v1560
        %1562 = vdwg.mxu0
        %1563 = vmatprep.subr.mxu0 0.0
        %1564 = vmatpush1.msra.mxu0 %v1490
        %1565 = vmatprep.subr.mxu0 0.0
        %1566 = vmatpush1.msra.mxu0 0.0
        %1567 = vmatprep.subr.mxu0 0.0
        %1568 = vmatpush1.msra.mxu0 0.0
        %1569 = vmatprep.subr.mxu0 0.0
        %1570 = vmatpush1.msra.mxu0 0.0
        %1571 = vmatprep.subr.mxu0 0.0
        %1572 = vmatpush1.msra.mxu0 0.0
        %1573 = vmatprep.subr.mxu0 0.0
        %1574 = vmatpush1.msra.mxu0 0.0
        %1575 = vmatprep.subr.mxu0 0.0
        %1576 = vmatpush1.msra.mxu0 0.0
        %1577 = vmatprep.subr.mxu0 0.0
        %1578 = vmatpush1.msra.mxu0 0.0
        %1579 = vmatprep.subr.mxu0 0.0
        %1580 = vmatpush1.msra.mxu0 0.0
        %1581 = vmatprep.subr.mxu0 0.0
        %1582 = vmatpush1.msra.mxu0 0.0
        %1583 = vmatprep.subr.mxu0 0.0
        %1584 = vmatpush1.msra.mxu0 0.0
        %1585 = vmatprep.subr.mxu0 0.0
        %1586 = vmatpush1.msra.mxu0 0.0
        %1587 = vmatprep.subr.mxu0 0.0
        %1588 = vmatpush1.msra.mxu0 0.0
        %1589 = vmatprep.subr.mxu0 0.0
        %1590 = vmatpush1.msra.mxu0 0.0
        %1591 = vmatprep.subr.mxu0 0.0
        %1592 = vmatpush1.msra.mxu0 0.0
        %1593 = vmatprep.subr.mxu0 0.0
        %1594 = vmatpush1.msra.mxu0 0.0
        %1595 = vmatprep.subr.mxu0 0.0
        %1596 = vmatpush1.msra.mxu0 0.0
        %1597 = vmatprep.subr.mxu0 0.0
        %1598 = vmatpush1.msra.mxu0 0.0
        %1599 = vmatprep.subr.mxu0 0.0
        %1600 = vmatpush1.msra.mxu0 0.0
        %1601 = vmatprep.subr.mxu0 0.0
        %1602 = vmatpush1.msra.mxu0 0.0
        %1603 = vmatprep.subr.mxu0 0.0
        %1604 = vmatpush1.msra.mxu0 0.0
        %1605 = vmatprep.subr.mxu0 0.0
        %1606 = vmatpush1.msra.mxu0 0.0
        %1607 = vmatprep.subr.mxu0 0.0
        %1608 = vmatpush1.msra.mxu0 0.0
        %1609 = vmatprep.subr.mxu0 0.0
        %1610 = vmatpush1.msra.mxu0 0.0
        %1611 = vmatprep.subr.mxu0 0.0
        %1612 = vmatpush1.msra.mxu0 0.0
        %1613 = vmatprep.subr.mxu0 0.0
        %1614 = vmatpush1.msra.mxu0 0.0
        %1615 = vmatprep.subr.mxu0 0.0
        %1616 = vmatpush1.msra.mxu0 0.0
        %1617 = vmatprep.subr.mxu0 0.0
        %1618 = vmatpush1.msra.mxu0 0.0
        %1619 = vmatprep.subr.mxu0 0.0
        %1620 = vmatpush1.msra.mxu0 0.0
        %1621 = vmatprep.subr.mxu0 0.0
        %1622 = vmatpush1.msra.mxu0 0.0
        %1623 = vmatprep.subr.mxu0 0.0
        %1624 = vmatpush1.msra.mxu0 0.0
        %1625 = vmatprep.subr.mxu0 0.0
        %1626 = vmatpush1.msra.mxu0 0.0
        %1627 = vmatprep.mubr.f32.mxu0 0.0
        %1628 = vmatmul.mubr.f32.gmra.mrb[0].mxu0 %v1484
        %v1629 = vpop.f32.mrb[0].mxu0
        %v1630 = vadd.f32 0.0, %v1629
        %v1631 = vpop.f32.mrb[0].mxu0
        %1632 = vdwg.mxu0
        %v1633 = vadd.f32 %v1469, %v1559
        %v1634 = vadd.f32 %v1470, %v1561
        %v1635 = vadd.f32 %v1471, %v1630
        %s1636 = scalar_lea.vmem %s1, 56
        %v1637 = vld [vmem:[%s1636] sm:$0xff]
        %1638 = vrot.lane.b32.xlu0 %v497, 91
        %v1639 = vpop.permute.xlu0 %1638
        %1640 = vrot.lane.b32.xlu0 %v504, 91
        %v1641 = vpop.permute.xlu0 %1640
        %1642 = vrot.lane.b32.xlu0 %v498, 91
        %v1643 = vpop.permute.xlu0 %1642
        %vm1644 = vcmask 744448
        %v1645 = vsel %vm1644, %v1639, %v1641
        %v1646 = vsel %vm1644, %v1641, %v1643
        %v1648 = vsel %vm514, %v1637, 0
        %v1650 = vsel %vm518, %v1645, 0
        %v1652 = vsel %vm518, %v1646, 0
        %v1654 = vsel %vm518, %v1643, 0
        %1656 = vmatprep.subr.mxu0 %v1652
        %1657 = vmatpush1.msra.mxu0 %v1650
        %1658 = vmatprep.subr.mxu0 0.0
        %1659 = vmatpush1.msra.mxu0 0.0
        %1660 = vmatprep.subr.mxu0 0.0
        %1661 = vmatpush1.msra.mxu0 0.0
        %1662 = vmatprep.subr.mxu0 0.0
        %1663 = vmatpush1.msra.mxu0 0.0
        %1664 = vmatprep.subr.mxu0 0.0
        %1665 = vmatpush1.msra.mxu0 0.0
        %1666 = vmatprep.subr.mxu0 0.0
        %1667 = vmatpush1.msra.mxu0 0.0
        %1668 = vmatprep.subr.mxu0 0.0
        %1669 = vmatpush1.msra.mxu0 0.0
        %1670 = vmatprep.subr.mxu0 0.0
        %1671 = vmatpush1.msra.mxu0 0.0
        %1672 = vmatprep.subr.mxu0 0.0
        %1673 = vmatpush1.msra.mxu0 0.0
        %1674 = vmatprep.subr.mxu0 0.0
        %1675 = vmatpush1.msra.mxu0 0.0
        %1676 = vmatprep.subr.mxu0 0.0
        %1677 = vmatpush1.msra.mxu0 0.0
        %1678 = vmatprep.subr.mxu0 0.0
        %1679 = vmatpush1.msra.mxu0 0.0
        %1680 = vmatprep.subr.mxu0 0.0
        %1681 = vmatpush1.msra.mxu0 0.0
        %1682 = vmatprep.subr.mxu0 0.0
        %1683 = vmatpush1.msra.mxu0 0.0
        %1684 = vmatprep.subr.mxu0 0.0
        %1685 = vmatpush1.msra.mxu0 0.0
        %1686 = vmatprep.subr.mxu0 0.0
        %1687 = vmatpush1.msra.mxu0 0.0
        %1688 = vmatprep.subr.mxu0 0.0
        %1689 = vmatpush1.msra.mxu0 0.0
        %1690 = vmatprep.subr.mxu0 0.0
        %1691 = vmatpush1.msra.mxu0 0.0
        %1692 = vmatprep.subr.mxu0 0.0
        %1693 = vmatpush1.msra.mxu0 0.0
        %1694 = vmatprep.subr.mxu0 0.0
        %1695 = vmatpush1.msra.mxu0 0.0
        %1696 = vmatprep.subr.mxu0 0.0
        %1697 = vmatpush1.msra.mxu0 0.0
        %1698 = vmatprep.subr.mxu0 0.0
        %1699 = vmatpush1.msra.mxu0 0.0
        %1700 = vmatprep.subr.mxu0 0.0
        %1701 = vmatpush1.msra.mxu0 0.0
        %1702 = vmatprep.subr.mxu0 0.0
        %1703 = vmatpush1.msra.mxu0 0.0
        %1704 = vmatprep.subr.mxu0 0.0
        %1705 = vmatpush1.msra.mxu0 0.0
        %1706 = vmatprep.subr.mxu0 0.0
        %1707 = vmatpush1.msra.mxu0 0.0
        %1708 = vmatprep.subr.mxu0 0.0
        %1709 = vmatpush1.msra.mxu0 0.0
        %1710 = vmatprep.subr.mxu0 0.0
        %1711 = vmatpush1.msra.mxu0 0.0
        %1712 = vmatprep.subr.mxu0 0.0
        %1713 = vmatpush1.msra.mxu0 0.0
        %1714 = vmatprep.subr.mxu0 0.0
        %1715 = vmatpush1.msra.mxu0 0.0
        %1716 = vmatprep.subr.mxu0 0.0
        %1717 = vmatpush1.msra.mxu0 0.0
        %1718 = vmatprep.subr.mxu0 0.0
        %1719 = vmatpush1.msra.mxu0 0.0
        %1720 = vmatprep.mubr.f32.mxu0 0.0
        %1721 = vmatmul.mubr.f32.gmra.mrb[0].mxu0 %v1648
        %v1722 = vpop.f32.mrb[0].mxu0
        %v1723 = vadd.f32 0.0, %v1722
        %v1724 = vpop.f32.mrb[0].mxu0
        %v1725 = vadd.f32 0.0, %v1724
        %1726 = vdwg.mxu0
        %1727 = vmatprep.subr.mxu0 0.0
        %1728 = vmatpush1.msra.mxu0 %v1654
        %1729 = vmatprep.subr.mxu0 0.0
        %1730 = vmatpush1.msra.mxu0 0.0
        %1731 = vmatprep.subr.mxu0 0.0
        %1732 = vmatpush1.msra.mxu0 0.0
        %1733 = vmatprep.subr.mxu0 0.0
        %1734 = vmatpush1.msra.mxu0 0.0
        %1735 = vmatprep.subr.mxu0 0.0
        %1736 = vmatpush1.msra.mxu0 0.0
        %1737 = vmatprep.subr.mxu0 0.0
        %1738 = vmatpush1.msra.mxu0 0.0
        %1739 = vmatprep.subr.mxu0 0.0
        %1740 = vmatpush1.msra.mxu0 0.0
        %1741 = vmatprep.subr.mxu0 0.0
        %1742 = vmatpush1.msra.mxu0 0.0
        %1743 = vmatprep.subr.mxu0 0.0
        %1744 = vmatpush1.msra.mxu0 0.0
        %1745 = vmatprep.subr.mxu0 0.0
        %1746 = vmatpush1.msra.mxu0 0.0
        %1747 = vmatprep.subr.mxu0 0.0
        %1748 = vmatpush1.msra.mxu0 0.0
        %1749 = vmatprep.subr.mxu0 0.0
        %1750 = vmatpush1.msra.mxu0 0.0
        %1751 = vmatprep.subr.mxu0 0.0
        %1752 = vmatpush1.msra.mxu0 0.0
        %1753 = vmatprep.subr.mxu0 0.0
        %1754 = vmatpush1.msra.mxu0 0.0
        %1755 = vmatprep.subr.mxu0 0.0
        %1756 = vmatpush1.msra.mxu0 0.0
        %1757 = vmatprep.subr.mxu0 0.0
        %1758 = vmatpush1.msra.mxu0 0.0
        %1759 = vmatprep.subr.mxu0 0.0
        %1760 = vmatpush1.msra.mxu0 0.0
        %1761 = vmatprep.subr.mxu0 0.0
        %1762 = vmatpush1.msra.mxu0 0.0
        %1763 = vmatprep.subr.mxu0 0.0
        %1764 = vmatpush1.msra.mxu0 0.0
        %1765 = vmatprep.subr.mxu0 0.0
        %1766 = vmatpush1.msra.mxu0 0.0
        %1767 = vmatprep.subr.mxu0 0.0
        %1768 = vmatpush1.msra.mxu0 0.0
        %1769 = vmatprep.subr.mxu0 0.0
        %1770 = vmatpush1.msra.mxu0 0.0
        %1771 = vmatprep.subr.mxu0 0.0
        %1772 = vmatpush1.msra.mxu0 0.0
        %1773 = vmatprep.subr.mxu0 0.0
        %1774 = vmatpush1.msra.mxu0 0.0
        %1775 = vmatprep.subr.mxu0 0.0
        %1776 = vmatpush1.msra.mxu0 0.0
        %1777 = vmatprep.subr.mxu0 0.0
        %1778 = vmatpush1.msra.mxu0 0.0
        %1779 = vmatprep.subr.mxu0 0.0
        %1780 = vmatpush1.msra.mxu0 0.0
        %1781 = vmatprep.subr.mxu0 0.0
        %1782 = vmatpush1.msra.mxu0 0.0
        %1783 = vmatprep.subr.mxu0 0.0
        %1784 = vmatpush1.msra.mxu0 0.0
        %1785 = vmatprep.subr.mxu0 0.0
        %1786 = vmatpush1.msra.mxu0 0.0
        %1787 = vmatprep.subr.mxu0 0.0
        %1788 = vmatpush1.msra.mxu0 0.0
        %1789 = vmatprep.subr.mxu0 0.0
        %1790 = vmatpush1.msra.mxu0 0.0
        %1791 = vmatprep.mubr.f32.mxu0 0.0
        %1792 = vmatmul.mubr.f32.gmra.mrb[0].mxu0 %v1648
        %v1793 = vpop.f32.mrb[0].mxu0
        %v1794 = vadd.f32 0.0, %v1793
        %v1795 = vpop.f32.mrb[0].mxu0
        %1796 = vdwg.mxu0
        %v1797 = vadd.f32 %v1633, %v1723
        %v1798 = vadd.f32 %v1634, %v1725
        %v1799 = vadd.f32 %v1635, %v1794
        %s1800 = scalar_lea.vmem %s1, 64
        %v1801 = vld [vmem:[%s1800] sm:$0xff]
        %1802 = vrot.lane.b32.xlu0 %v497, 90
        %v1803 = vpop.permute.xlu0 %1802
        %1804 = vrot.lane.b32.xlu0 %v504, 90
        %v1805 = vpop.permute.xlu0 %1804
        %1806 = vrot.lane.b32.xlu0 %v498, 90
        %v1807 = vpop.permute.xlu0 %1806
        %vm1808 = vcmask 736256
        %v1809 = vsel %vm1808, %v1803, %v1805
        %v1810 = vsel %vm1808, %v1805, %v1807
        %v1812 = vsel %vm514, %v1801, 0
        %v1814 = vsel %vm518, %v1809, 0
        %v1816 = vsel %vm518, %v1810, 0
        %v1818 = vsel %vm518, %v1807, 0
        %1820 = vmatprep.subr.mxu0 %v1816
        %1821 = vmatpush1.msra.mxu0 %v1814
        %1822 = vmatprep.subr.mxu0 0.0
        %1823 = vmatpush1.msra.mxu0 0.0
        %1824 = vmatprep.subr.mxu0 0.0
        %1825 = vmatpush1.msra.mxu0 0.0
        %1826 = vmatprep.subr.mxu0 0.0
        %1827 = vmatpush1.msra.mxu0 0.0
        %1828 = vmatprep.subr.mxu0 0.0
        %1829 = vmatpush1.msra.mxu0 0.0
        %1830 = vmatprep.subr.mxu0 0.0
        %1831 = vmatpush1.msra.mxu0 0.0
        %1832 = vmatprep.subr.mxu0 0.0
        %1833 = vmatpush1.msra.mxu0 0.0
        %1834 = vmatprep.subr.mxu0 0.0
        %1835 = vmatpush1.msra.mxu0 0.0
        %1836 = vmatprep.subr.mxu0 0.0
        %1837 = vmatpush1.msra.mxu0 0.0
        %1838 = vmatprep.subr.mxu0 0.0
        %1839 = vmatpush1.msra.mxu0 0.0
        %1840 = vmatprep.subr.mxu0 0.0
        %1841 = vmatpush1.msra.mxu0 0.0
        %1842 = vmatprep.subr.mxu0 0.0
        %1843 = vmatpush1.msra.mxu0 0.0
        %1844 = vmatprep.subr.mxu0 0.0
        %1845 = vmatpush1.msra.mxu0 0.0
        %1846 = vmatprep.subr.mxu0 0.0
        %1847 = vmatpush1.msra.mxu0 0.0
        %1848 = vmatprep.subr.mxu0 0.0
        %1849 = vmatpush1.msra.mxu0 0.0
        %1850 = vmatprep.subr.mxu0 0.0
        %1851 = vmatpush1.msra.mxu0 0.0
        %1852 = vmatprep.subr.mxu0 0.0
        %1853 = vmatpush1.msra.mxu0 0.0
        %1854 = vmatprep.subr.mxu0 0.0
        %1855 = vmatpush1.msra.mxu0 0.0
        %1856 = vmatprep.subr.mxu0 0.0
        %1857 = vmatpush1.msra.mxu0 0.0
        %1858 = vmatprep.subr.mxu0 0.0
        %1859 = vmatpush1.msra.mxu0 0.0
        %1860 = vmatprep.subr.mxu0 0.0
        %1861 = vmatpush1.msra.mxu0 0.0
        %1862 = vmatprep.subr.mxu0 0.0
        %1863 = vmatpush1.msra.mxu0 0.0
        %1864 = vmatprep.subr.mxu0 0.0
        %1865 = vmatpush1.msra.mxu0 0.0
        %1866 = vmatprep.subr.mxu0 0.0
        %1867 = vmatpush1.msra.mxu0 0.0
        %1868 = vmatprep.subr.mxu0 0.0
        %1869 = vmatpush1.msra.mxu0 0.0
        %1870 = vmatprep.subr.mxu0 0.0
        %1871 = vmatpush1.msra.mxu0 0.0
        %1872 = vmatprep.subr.mxu0 0.0
        %1873 = vmatpush1.msra.mxu0 0.0
        %1874 = vmatprep.subr.mxu0 0.0
        %1875 = vmatpush1.msra.mxu0 0.0
        %1876 = vmatprep.subr.mxu0 0.0
        %1877 = vmatpush1.msra.mxu0 0.0
        %1878 = vmatprep.subr.mxu0 0.0
        %1879 = vmatpush1.msra.mxu0 0.0
        %1880 = vmatprep.subr.mxu0 0.0
        %1881 = vmatpush1.msra.mxu0 0.0
        %1882 = vmatprep.subr.mxu0 0.0
        %1883 = vmatpush1.msra.mxu0 0.0
        %1884 = vmatprep.mubr.f32.mxu0 0.0
        %1885 = vmatmul.mubr.f32.gmra.mrb[0].mxu0 %v1812
        %v1886 = vpop.f32.mrb[0].mxu0
        %v1887 = vadd.f32 0.0, %v1886
        %v1888 = vpop.f32.mrb[0].mxu0
        %v1889 = vadd.f32 0.0, %v1888
        %1890 = vdwg.mxu0
        %1891 = vmatprep.subr.mxu0 0.0
        %1892 = vmatpush1.msra.mxu0 %v1818
        %1893 = vmatprep.subr.mxu0 0.0
        %1894 = vmatpush1.msra.mxu0 0.0
        %1895 = vmatprep.subr.mxu0 0.0
        %1896 = vmatpush1.msra.mxu0 0.0
        %1897 = vmatprep.subr.mxu0 0.0
        %1898 = vmatpush1.msra.mxu0 0.0
        %1899 = vmatprep.subr.mxu0 0.0
        %1900 = vmatpush1.msra.mxu0 0.0
        %1901 = vmatprep.subr.mxu0 0.0
        %1902 = vmatpush1.msra.mxu0 0.0
        %1903 = vmatprep.subr.mxu0 0.0
        %1904 = vmatpush1.msra.mxu0 0.0
        %1905 = vmatprep.subr.mxu0 0.0
        %1906 = vmatpush1.msra.mxu0 0.0
        %1907 = vmatprep.subr.mxu0 0.0
        %1908 = vmatpush1.msra.mxu0 0.0
        %1909 = vmatprep.subr.mxu0 0.0
        %1910 = vmatpush1.msra.mxu0 0.0
        %1911 = vmatprep.subr.mxu0 0.0
        %1912 = vmatpush1.msra.mxu0 0.0
        %1913 = vmatprep.subr.mxu0 0.0
        %1914 = vmatpush1.msra.mxu0 0.0
        %1915 = vmatprep.subr.mxu0 0.0
        %1916 = vmatpush1.msra.mxu0 0.0
        %1917 = vmatprep.subr.mxu0 0.0
        %1918 = vmatpush1.msra.mxu0 0.0
        %1919 = vmatprep.subr.mxu0 0.0
        %1920 = vmatpush1.msra.mxu0 0.0
        %1921 = vmatprep.subr.mxu0 0.0
        %1922 = vmatpush1.msra.mxu0 0.0
        %1923 = vmatprep.subr.mxu0 0.0
        %1924 = vmatpush1.msra.mxu0 0.0
        %1925 = vmatprep.subr.mxu0 0.0
        %1926 = vmatpush1.msra.mxu0 0.0
        %1927 = vmatprep.subr.mxu0 0.0
        %1928 = vmatpush1.msra.mxu0 0.0
        %1929 = vmatprep.subr.mxu0 0.0
        %1930 = vmatpush1.msra.mxu0 0.0
        %1931 = vmatprep.subr.mxu0 0.0
        %1932 = vmatpush1.msra.mxu0 0.0
        %1933 = vmatprep.subr.mxu0 0.0
        %1934 = vmatpush1.msra.mxu0 0.0
        %1935 = vmatprep.subr.mxu0 0.0
        %1936 = vmatpush1.msra.mxu0 0.0
        %1937 = vmatprep.subr.mxu0 0.0
        %1938 = vmatpush1.msra.mxu0 0.0
        %1939 = vmatprep.subr.mxu0 0.0
        %1940 = vmatpush1.msra.mxu0 0.0
        %1941 = vmatprep.subr.mxu0 0.0
        %1942 = vmatpush1.msra.mxu0 0.0
        %1943 = vmatprep.subr.mxu0 0.0
        %1944 = vmatpush1.msra.mxu0 0.0
        %1945 = vmatprep.subr.mxu0 0.0
        %1946 = vmatpush1.msra.mxu0 0.0
        %1947 = vmatprep.subr.mxu0 0.0
        %1948 = vmatpush1.msra.mxu0 0.0
        %1949 = vmatprep.subr.mxu0 0.0
        %1950 = vmatpush1.msra.mxu0 0.0
        %1951 = vmatprep.subr.mxu0 0.0
        %1952 = vmatpush1.msra.mxu0 0.0
        %1953 = vmatprep.subr.mxu0 0.0
        %1954 = vmatpush1.msra.mxu0 0.0
        %1955 = vmatprep.mubr.f32.mxu0 0.0
        %1956 = vmatmul.mubr.f32.gmra.mrb[0].mxu0 %v1812
        %v1957 = vpop.f32.mrb[0].mxu0
        %v1958 = vadd.f32 0.0, %v1957
        %v1959 = vpop.f32.mrb[0].mxu0
        %1960 = vdwg.mxu0
        %v1961 = vadd.f32 %v1797, %v1887
        %v1962 = vadd.f32 %v1798, %v1889
        %v1963 = vadd.f32 %v1799, %v1958
        %v1964 = vld [vmem:[%s2] sm:$0xff]
        %1966 = vset.pattern.permute.xlu0 0
        %1967 = vperm.xlu0 %1966, %v1964
        %v1968 = vpop.permute.xlu0 %1967
        %v1970 = vadd.f32 %v1961, %v1968
        %v1971 = vadd.f32 %v1962, %v1968
        %v1972 = vadd.f32 %v1963, %v1968
        %1974 = vset.pattern.permute.xlu0 0
        %1975 = vperm.xlu0 %1974, %v496
        %v1976 = vpop.permute.xlu0 %1975
        %v1978 = vmul.f32 %v1970, %v1976
        %v1979 = vmul.f32 %v1971, %v1976
        %v1980 = vmul.f32 %v1972, %v1976
        %1982 = vset.pattern.permute.xlu0 0
        %1983 = vperm.xlu0 %1982, %v475
        %v1984 = vpop.permute.xlu0 %1983
        %v1986 = vadd.f32 %v1978, %v1984
        %v1987 = vadd.f32 %v1979, %v1984
        %v1988 = vadd.f32 %v1980, %v1984
        %1989 = vst [vmem:[%s282] sm:$0xff] %v1986
        %1990 = vst [vmem:[%s282 + $0x8] sm:$0xff] %v1987
        %vm1991 = vcmask 261120
        %1992 = vst.msk [vmem:[%s282 + $0x10] sm:$0xff] %vm1991, %v1988
        %s1993 = sand.u32 %s186, 1
        %s1994 = scalar_lea.sflag [#allocation3], %s1993
        %s1995 = sand.u32 %s186, 1
        %s1996 = smul.addr %s1995, 24
        %s1997 = scalar_lea.vmem [#allocation2], %s1996
        // Predicated region
        $region49: #{tpu_custom_call.1} parent=47 // pred_check
          %p1998 = pneg %p196
        $region50: #{tpu_custom_call.1} parent=47 // pred_check_branch
          %2000 = sbr.rel (%p1998) target = $region52
        $region51: #{tpu_custom_call.1} parent=47 // pred_region
          %s2002 = ssub.s32 384, 384
          %2003 = vsyncadd %s1994, %s2002
          %s2004 = smul.addr %s21, 3
          %s2005 = smul.addr %s2004, 128
          %s2006 = scalar_lea.hbm %s7, %s2005
          %s2008 = sshll.u32 %s1997, 4
          %s2009 = int_to_ptr.vmem [resolvable:$true] %s2008
          %2011 = dma.vmem_to_hbm [thread:$0]  %s2009, 384, %s2006, %s1994
        $region52: #{tpu_custom_call.1} parent=47 // pred_fallthru
          _
      $region48: #{tpu_custom_call.1} parent=5 // pred_fallthru
        _
      %p2012 = scmp.le.s32.totalorder 2, %s16
      // Predicated region
      $region53: #{tpu_custom_call.1} parent=5 // pred_check
        %p2013 = pneg %p2012
      $region54: #{tpu_custom_call.1} parent=5 // pred_check_branch
        %2015 = sbr.rel (%p2013) target = $region56
      $region55: #{tpu_custom_call.1} parent=5 // pred_region
        %s2016 = ssub.s32 %s16, 2
        // Predicated region
        $region57: #{tpu_custom_call.1} parent=55 // pred_check
          %p2017 = pneg %p202
        $region58: #{tpu_custom_call.1} parent=55 // pred_check_branch
          %2019 = sbr.rel (%p2017) target = $region60
        $region59: #{tpu_custom_call.1} parent=55 // pred_region
          %s2020 = sand.u32 %s187, 1
          %s2021 = scalar_lea.sflag [#allocation3], %s2020
          %s2022 = sand.u32 %s187, 1
          %s2023 = smul.addr %s2022, 24
          %s2024 = scalar_lea.vmem [#allocation2], %s2023
          %2025 = dma.done %s2021, 384
        $region60: #{tpu_custom_call.1} parent=55 // pred_fallthru
          _
      $region56: #{tpu_custom_call.1} parent=5 // pred_fallthru
        _
    $region6: #{tpu_custom_call.1} parent=1 // loop_footer
      %s20 = sadd.s32 1, %s16
    $region7: #{tpu_custom_call.1} parent=1 // loop_footer_branch
      %15 = sbr.rel target = $region3
    $region8: #{tpu_custom_call.1} parent=1 // loop_exit
      _
    %2026 = vsyncpa [#allocation3], 1
    %s2027 = scalar_lea.sflag [#allocation3], 1
    %2028 = vsyncpa %s2027, 1

</llo_original>
